<compile_context>
chip_gen: v7x
topology: tpu7x:2x2x1
jax: 0.10.0
libtpu: 0.0.40
codegen_flags: <defaults>
</compile_context>

<pallas_src>
import jax
import jax.numpy as jnp
from jax.experimental import pallas as pl
from jax.experimental.pallas import tpu as pltpu


# ----------------------------- kernels ------------------------------------ #

def _mlp_body(t_ref, x_ref, w1_ref, b1_ref, w1t_ref, w2_ref, b2_ref):
    # t.repeat(B) + reshape_time_like == broadcasting a single scalar; fold it
    # into an effective first-layer bias (one (1,H) FMA, no (B,1) tile / DMA).
    t = t_ref[0, 0]                                               # SMEM scalar
    b1_eff = b1_ref[...] + t * w1t_ref[...]                       # (1, H) f32
    # bf16 operands on the MXU, f32 accumulation.
    h = jnp.dot(x_ref[...], w1_ref[...],
                preferred_element_type=jnp.float32) + b1_eff      # (tb, H) MXU
    # NOTE: tanh-approx GELU (EUP path). PyTorch's default nn.GELU is exact
    # erf; flip approximate=False if the wrapped net uses the exact variant.
    a = jax.nn.gelu(h, approximate=True)
    y = jnp.dot(a.astype(w2_ref.dtype), w2_ref[...],
                preferred_element_type=jnp.float32) + b2_ref[...]  # (tb, D) MXU
    return y


def _mlp_kernel(t_ref, x_ref, w1_ref, b1_ref, w1t_ref, w2_ref, b2_ref, o_ref):
    y = _mlp_body(t_ref, x_ref, w1_ref, b1_ref, w1t_ref, w2_ref, b2_ref)
    o_ref[...] = y.astype(o_ref.dtype)


def _mlp_kernel_masked(t_ref, x_ref, mask_ref, w1_ref, b1_ref, w1t_ref,
                       w2_ref, b2_ref, o_ref):
    y = _mlp_body(t_ref, x_ref, w1_ref, b1_ref, w1t_ref, w2_ref, b2_ref)
    # mask_ref is (tile_b, D) or a broadcastable (1, D) block, bf16.
    o_ref[...] = (y * mask_ref[...].astype(jnp.float32)).astype(o_ref.dtype)


# --------------------------- tile / VMEM sizing ----------------------------- #

def _round_up(n, m):
    return ((n + m - 1) // m) * m


def _vmem_capacity_bytes():
    try:
        return int(pltpu.get_tpu_info().vmem_capacity_bytes)
    except Exception:
        return 64 * 1024 * 1024          # conservative default (v7x per-TC)


def _pick_tile_b(B_pad, D, masked_rows, out_bytes):
    """Batch tile: multiple of 8, divides B_pad, sized from a VMEM byte budget,
    capped so the grid has >= 2 steps (lets v7x shard across both TCs)."""
    budget = _vmem_capacity_bytes() // 4          # headroom for weights/scratch
    # streamed + double-buffered bytes per batch row: x (bf16) [+ mask bf16] + out
    per_row = 2 * D * (2 + (2 if masked_rows else 0) + out_bytes)
    tile = min(max(budget // max(per_row, 1), 8), 2048, B_pad)
    if B_pad >= 16:
        tile = min(tile, B_pad // 2)              # >= 2 grid steps when possible
    tile = max(8, tile - tile % 8)
    while B_pad % tile != 0:                      # terminates at 8 (B_pad % 8 == 0)
        tile -= 8
    return int(tile)


# ----------------------------- wrapper ------------------------------------ #

def torchdyn_wrapper_forward(t, x, mask, params, *, tile_b=None):
    """Replicates TorchdynWrapper.forward(t, x) for the synthetic time-MLP net.

    t    : scalar ODE solver time (python float / 0-d / 1-element array)
    x    : (B, D) float32 state
    mask : None, (B, D), or broadcastable (D,) / (1, D) feature mask
    """
    B, D = x.shape
    w1, w1t, b1, w2, b2 = params
    H = w1.shape[1]
    out_dtype = x.dtype
    out_bytes = jnp.dtype(out_dtype).itemsize

    # --- wrapper glue: torchdyn passes a scalar solver time; repeat(B) +
    #     reshape_time_like is a pure broadcast -> one (1,1) SMEM scalar.
    t_smem = jnp.asarray(t, dtype=jnp.float32).reshape(-1)
    assert t_smem.size == 1, "torchdyn solver time is a scalar"
    t_smem = t_smem.reshape(1, 1)

    # bf16 MXU operands; accumulation / bias / gelu stay f32 in-kernel.
    x_bf = x.astype(jnp.bfloat16)
    w1_bf = jnp.asarray(w1, jnp.bfloat16)
    w2_bf = jnp.asarray(w2, jnp.bfloat16)
    b1_f = jnp.asarray(b1, jnp.float32).reshape(1, H)
    w1t_f = jnp.asarray(w1t, jnp.float32).reshape(1, H)
    b2_f = jnp.asarray(b2, jnp.float32).reshape(1, D)

    # Mask at its natural (broadcastable) shape, in bf16 (half the HBM bytes).
    mask_mode = "none"
    mask_arr = None
    if mask is not None:
        mask_arr = jnp.asarray(mask, jnp.bfloat16)
        if mask_arr.ndim == 1 and mask_arr.shape[0] == D:
            mask_arr = mask_arr.reshape(1, D)
        if mask_arr.shape == (1, D):
            mask_mode = "bcast"                  # grid-invariant (1, D) block
        else:
            mask_arr = jnp.broadcast_to(mask_arr, (B, D))
            mask_mode = "row"                    # genuinely per-row: stream it

    # Pad ragged batches to a sublane multiple instead of one monolithic block.
    B_pad = _round_up(B, 8)
    if tile_b is None:
        tile_b = _pick_tile_b(B_pad, D, mask_mode == "row", out_bytes)
    if B_pad != B:
        x_bf = jnp.pad(x_bf, ((0, B_pad - B), (0, 0)))
        if mask_mode == "row":
            mask_arr = jnp.pad(mask_arr, ((0, B_pad - B), (0, 0)))
    grid = (B_pad // tile_b,)

    # Generation-aware VMEM limit (v7x: 64 MiB/TC, v5e/v6e: 128 MiB).
    vmem_cap = _vmem_capacity_bytes()
    weight_bytes = 2 * ((D * H + H * D) * 2 + (2 * H + D) * 4)   # worst case x2
    stream_bytes = 2 * tile_b * D * (2 + (2 if mask_mode == "row" else 0)
                                     + out_bytes)
    vmem_limit = int(min(vmem_cap, weight_bytes + stream_bytes + (8 << 20)))
    cp = pltpu.CompilerParams(dimension_semantics=("parallel",),
                              vmem_limit_bytes=vmem_limit)

    smem_spec = pl.BlockSpec(memory_space=pltpu.MemorySpace.SMEM)   # (1,1) t
    row_spec = pl.BlockSpec((tile_b, D), lambda i: (i, 0))          # x/mask/out

    def invariant(shape, single_buffer):
        # Grid-invariant blocks are loaded once; single-buffering them halves
        # their VMEM footprint (matters most on v7x's 64 MiB as H/D grow).
        if single_buffer:
            return pl.BlockSpec(shape, lambda i: (0, 0),
                                pipeline_mode=pl.Buffered(1))
        return pl.BlockSpec(shape, lambda i: (0, 0))

    def run(single_buffer_weights):
        w1_spec = invariant((D, H), single_buffer_weights)
        vec_h_spec = invariant((1, H), single_buffer_weights)
        w2_spec = invariant((H, D), single_buffer_weights)
        vec_d_spec = invariant((1, D), single_buffer_weights)

        in_specs = [smem_spec, row_spec]
        args = [t_smem, x_bf]
        kernel = _mlp_kernel
        if mask_mode == "row":
            in_specs.append(row_spec)
            args.append(mask_arr)
            kernel = _mlp_kernel_masked
        elif mask_mode == "bcast":
            in_specs.append(invariant((1, D), single_buffer_weights))
            args.append(mask_arr)
            kernel = _mlp_kernel_masked
        in_specs += [w1_spec, vec_h_spec, vec_h_spec, w2_spec, vec_d_spec]
        args += [w1_bf, b1_f, w1t_f, w2_bf, b2_f]

        return pl.pallas_call(
            kernel,
            out_shape=jax.ShapeDtypeStruct((B_pad, D), out_dtype),
            grid=grid,
            in_specs=in_specs,
            out_specs=row_spec,
            compiler_params=cp,
        )(*args)

    try:
        out = run(single_buffer_weights=True)
    except Exception:
        # pl.Buffered(1) rejected by this jax build -> default double buffer.
        out = run(single_buffer_weights=False)

    return out[:B] if B_pad != B else out


# --------------------------- params / reference ---------------------------- #

def init_params(key, D, H):
    k1, k2, k3, k4, k5 = jax.random.split(key, 5)
    w1 = jax.random.normal(k1, (D, H), jnp.float32) * 0.1
    w1t = jax.random.normal(k2, (1, H), jnp.float32) * 0.1
    b1 = jax.random.normal(k3, (1, H), jnp.float32) * 0.05
    w2 = jax.random.normal(k4, (H, D), jnp.float32) * 0.1
    b2 = jax.random.normal(k5, (1, D), jnp.float32) * 0.05
    return (w1, w1t, b1, w2, b2)


def reference_forward(t, x, mask, params):
    """Pure-JAX reference mirroring the kernel's bf16-in / f32-accumulate math."""
    w1, w1t, b1, w2, b2 = params
    t_s = jnp.asarray(t, jnp.float32).reshape(())
    hp = jax.lax.Precision.HIGHEST
    xc = x.astype(jnp.bfloat16).astype(jnp.float32)
    w1c = w1.astype(jnp.bfloat16).astype(jnp.float32)
    w2c = w2.astype(jnp.bfloat16).astype(jnp.float32)
    h = jnp.dot(xc, w1c, precision=hp) + (b1 + t_s * w1t)
    a = jax.nn.gelu(h, approximate=True)
    y = jnp.dot(a.astype(jnp.bfloat16).astype(jnp.float32), w2c, precision=hp) + b2
    if mask is not None:
        y = y * jnp.asarray(mask, jnp.bfloat16).astype(jnp.float32)
    return y


# --------------------------------- main ------------------------------------ #

if __name__ == "__main__":
    key = jax.random.PRNGKey(0)
    kx, kp, km = jax.random.split(key, 3)

    # Small but lane-dense shapes: B multiple of 8, D/H multiples of 128.
    B, D, H = 32, 128, 256
    x = jax.random.normal(kx, (B, D), jnp.float32)
    t = jnp.asarray(0.5, jnp.float32)                     # scalar ODE time
    mask = (jax.random.uniform(km, (B, D)) > 0.25).astype(jnp.float32)
    params = init_params(kp, D, H)

    # per-row mask, no mask
    out_masked = jax.block_until_ready(torchdyn_wrapper_forward(t, x, mask, params))
    out_nomask = jax.block_until_ready(torchdyn_wrapper_forward(t, x, None, params))

    # ragged batch -> exercises the pad-to-multiple-of-8 path
    Br = 30
    xr = x[:Br]
    out_ragged = jax.block_until_ready(torchdyn_wrapper_forward(t, xr, None, params))

    # broadcastable feature mask -> grid-invariant (1, D) mask block
    fmask = (jax.random.uniform(jax.random.PRNGKey(7), (D,)) > 0.5).astype(jnp.float32)
    out_fmask = jax.block_until_ready(torchdyn_wrapper_forward(t, x, fmask, params))

    ref_masked = reference_forward(t, x, mask, params)
    ref_nomask = reference_forward(t, x, None, params)
    ref_ragged = reference_forward(t, xr, None, params)
    ref_fmask = reference_forward(t, x, fmask, params)

    for got, ref in [(out_masked, ref_masked), (out_nomask, ref_nomask),
                     (out_ragged, ref_ragged), (out_fmask, ref_fmask)]:
        assert got.shape == ref.shape, (got.shape, ref.shape)
        assert jnp.allclose(got, ref, atol=1e-2, rtol=1e-2), \
            float(jnp.max(jnp.abs(got - ref)))

    print("KERNEL_OK")
</pallas_src>

<mosaic_0001>
module attributes {stable_mosaic.version = 11 : i64} {
  func.func @_mlp_kernel_masked(%arg0: i32, %arg1: memref<1x1xf32, #tpu.memory_space<smem>>, %arg2: memref<16x128xbf16, #tpu.memory_space<vmem>>, %arg3: memref<16x128xbf16, #tpu.memory_space<vmem>>, %arg4: memref<128x256xbf16, #tpu.memory_space<vmem>>, %arg5: memref<1x256xf32, #tpu.memory_space<vmem>>, %arg6: memref<1x256xf32, #tpu.memory_space<vmem>>, %arg7: memref<256x128xbf16, #tpu.memory_space<vmem>>, %arg8: memref<1x128xf32, #tpu.memory_space<vmem>>, %arg9: memref<16x128xf32, #tpu.memory_space<vmem>>) attributes {dimension_semantics = [#tpu.dimension_semantics<parallel>], iteration_bounds = array<i64: 2>, scalar_prefetch = 0 : i64, scratch_operands = 0 : i64, tpu.core_type = #tpu.core_type<tc>, window_params = [{transform_indices = @transform_0, window_bounds = array<i64: 1, 1>}, {transform_indices = @transform_1, window_bounds = array<i64: 16, 128>}, {transform_indices = @transform_2, window_bounds = array<i64: 16, 128>}, {pipeline_mode = #tpu.pipeline_mode<synchronous>, transform_indices = @transform_3, window_bounds = array<i64: 128, 256>}, {pipeline_mode = #tpu.pipeline_mode<synchronous>, transform_indices = @transform_4, window_bounds = array<i64: 1, 256>}, {pipeline_mode = #tpu.pipeline_mode<synchronous>, transform_indices = @transform_5, window_bounds = array<i64: 1, 256>}, {pipeline_mode = #tpu.pipeline_mode<synchronous>, transform_indices = @transform_6, window_bounds = array<i64: 256, 128>}, {pipeline_mode = #tpu.pipeline_mode<synchronous>, transform_indices = @transform_7, window_bounds = array<i64: 1, 128>}, {transform_indices = @transform_8, window_bounds = array<i64: 16, 128>}]} {
    %c0 = arith.constant 0 : index
    %c0_0 = arith.constant 0 : index
    %0 = memref.load %arg1[%c0, %c0_0] : memref<1x1xf32, #tpu.memory_space<smem>>
    %c0_1 = arith.constant 0 : index
    %c0_2 = arith.constant 0 : index
    %1 = vector.load %arg5[%c0_1, %c0_2] : memref<1x256xf32, #tpu.memory_space<vmem>>, vector<1x256xf32>
    %c0_3 = arith.constant 0 : index
    %c0_4 = arith.constant 0 : index
    %2 = vector.load %arg6[%c0_3, %c0_4] : memref<1x256xf32, #tpu.memory_space<vmem>>, vector<1x256xf32>
    %3 = vector.broadcast %0 : f32 to vector<1x256xf32>
    %4 = arith.mulf %3, %2 : vector<1x256xf32>
    %5 = arith.addf %1, %4 : vector<1x256xf32>
    %c0_5 = arith.constant 0 : index
    %c0_6 = arith.constant 0 : index
    %6 = vector.load %arg2[%c0_5, %c0_6] : memref<16x128xbf16, #tpu.memory_space<vmem>>, vector<16x128xbf16>
    %c0_7 = arith.constant 0 : index
    %c0_8 = arith.constant 0 : index
    %7 = vector.load %arg4[%c0_7, %c0_8] : memref<128x256xbf16, #tpu.memory_space<vmem>>, vector<128x256xbf16>
    %cst = arith.constant dense<0.000000e+00> : vector<16x256xf32>
    %8 = tpu.matmul %6, %7, %cst {dimension_numbers = #tpu.dot_dimension_numbers<[1], [0], [0], [1], [0, 0, 1, 1], [], []>} : vector<16x128xbf16>, vector<128x256xbf16>, vector<16x256xf32> -> vector<16x256xf32>
    %9 = vector.broadcast %5 : vector<1x256xf32> to vector<16x256xf32>
    %10 = arith.addf %8, %9 : vector<16x256xf32>
    %11 = arith.mulf %10, %10 : vector<16x256xf32>
    %12 = arith.mulf %10, %11 : vector<16x256xf32>
    %cst_9 = arith.constant 4.471500e-02 : f32
    %13 = vector.broadcast %cst_9 : f32 to vector<16x256xf32>
    %14 = arith.mulf %13, %12 : vector<16x256xf32>
    %15 = arith.addf %10, %14 : vector<16x256xf32>
    %cst_10 = arith.constant 0.797884583 : f32
    %16 = vector.broadcast %cst_10 : f32 to vector<16x256xf32>
    %17 = arith.mulf %16, %15 : vector<16x256xf32>
    %18 = math.tanh %17 : vector<16x256xf32>
    %cst_11 = arith.constant 1.000000e+00 : f32
    %19 = vector.broadcast %cst_11 : f32 to vector<16x256xf32>
    %20 = arith.addf %19, %18 : vector<16x256xf32>
    %cst_12 = arith.constant 5.000000e-01 : f32
    %21 = vector.broadcast %cst_12 : f32 to vector<16x256xf32>
    %22 = arith.mulf %21, %20 : vector<16x256xf32>
    %23 = arith.mulf %10, %22 : vector<16x256xf32>
    %24 = arith.truncf %23 : vector<16x256xf32> to vector<16x256xbf16>
    %c0_13 = arith.constant 0 : index
    %c0_14 = arith.constant 0 : index
    %25 = vector.load %arg7[%c0_13, %c0_14] : memref<256x128xbf16, #tpu.memory_space<vmem>>, vector<256x128xbf16>
    %cst_15 = arith.constant dense<0.000000e+00> : vector<16x128xf32>
    %26 = tpu.matmul %24, %25, %cst_15 {dimension_numbers = #tpu.dot_dimension_numbers<[1], [0], [0], [1], [0, 0, 1, 1], [], []>} : vector<16x256xbf16>, vector<256x128xbf16>, vector<16x128xf32> -> vector<16x128xf32>
    %c0_16 = arith.constant 0 : index
    %c0_17 = arith.constant 0 : index
    %27 = vector.load %arg8[%c0_16, %c0_17] : memref<1x128xf32, #tpu.memory_space<vmem>>, vector<1x128xf32>
    %28 = vector.broadcast %27 : vector<1x128xf32> to vector<16x128xf32>
    %29 = arith.addf %26, %28 : vector<16x128xf32>
    %c0_18 = arith.constant 0 : index
    %c0_19 = arith.constant 0 : index
    %30 = vector.load %arg3[%c0_18, %c0_19] : memref<16x128xbf16, #tpu.memory_space<vmem>>, vector<16x128xbf16>
    %31 = arith.extf %30 : vector<16x128xbf16> to vector<16x128xf32>
    %32 = arith.mulf %29, %31 : vector<16x128xf32>
    %c0_20 = arith.constant 0 : index
    %c0_21 = arith.constant 0 : index
    %33 = vector.load %arg9[%c0_20, %c0_21] : memref<16x128xf32, #tpu.memory_space<vmem>>, vector<16x128xf32>
    tpu.vector_store %arg9[%c0_20, %c0_21], %32 {strides = array<i32>} : memref<16x128xf32, #tpu.memory_space<vmem>>, vector<16x128xf32>,
    return
  }
  func.func @transform_0(%arg0: i32) -> (i32, i32) {
    %c0_i32 = arith.constant 0 : i32
    %c0_i32_0 = arith.constant 0 : i32
    %c0_i32_1 = arith.constant 0 : i32
    return %c0_i32, %c0_i32_0 : i32, i32
  }
  func.func @transform_1(%arg0: i32) -> (i32, i32) {
    %c0_i32 = arith.constant 0 : i32
    %c0_i32_0 = arith.constant 0 : i32
    return %arg0, %c0_i32 : i32, i32
  }
  func.func @transform_2(%arg0: i32) -> (i32, i32) {
    %c0_i32 = arith.constant 0 : i32
    %c0_i32_0 = arith.constant 0 : i32
    return %arg0, %c0_i32 : i32, i32
  }
  func.func @transform_3(%arg0: i32) -> (i32, i32) {
    %c0_i32 = arith.constant 0 : i32
    %c0_i32_0 = arith.constant 0 : i32
    %c0_i32_1 = arith.constant 0 : i32
    return %c0_i32, %c0_i32_0 : i32, i32
  }
  func.func @transform_4(%arg0: i32) -> (i32, i32) {
    %c0_i32 = arith.constant 0 : i32
    %c0_i32_0 = arith.constant 0 : i32
    %c0_i32_1 = arith.constant 0 : i32
    return %c0_i32, %c0_i32_0 : i32, i32
  }
  func.func @transform_5(%arg0: i32) -> (i32, i32) {
    %c0_i32 = arith.constant 0 : i32
    %c0_i32_0 = arith.constant 0 : i32
    %c0_i32_1 = arith.constant 0 : i32
    return %c0_i32, %c0_i32_0 : i32, i32
  }
  func.func @transform_6(%arg0: i32) -> (i32, i32) {
    %c0_i32 = arith.constant 0 : i32
    %c0_i32_0 = arith.constant 0 : i32
    %c0_i32_1 = arith.constant 0 : i32
    return %c0_i32, %c0_i32_0 : i32, i32
  }
  func.func @transform_7(%arg0: i32) -> (i32, i32) {
    %c0_i32 = arith.constant 0 : i32
    %c0_i32_0 = arith.constant 0 : i32
    %c0_i32_1 = arith.constant 0 : i32
    return %c0_i32, %c0_i32_0 : i32, i32
  }
  func.func @transform_8(%arg0: i32) -> (i32, i32) {
    %c0_i32 = arith.constant 0 : i32
    %c0_i32_0 = arith.constant 0 : i32
    return %arg0, %c0_i32 : i32, i32
  }
}

module attributes {stable_mosaic.version = 11 : i64} {
  func.func @_mlp_kernel_masked(%arg0: i32, %arg1: memref<1x1xf32, #tpu.memory_space<smem>>, %arg2: memref<16x128xbf16, #tpu.memory_space<vmem>>, %arg3: memref<16x128xbf16, #tpu.memory_space<vmem>>, %arg4: memref<128x256xbf16, #tpu.memory_space<vmem>>, %arg5: memref<1x256xf32, #tpu.memory_space<vmem>>, %arg6: memref<1x256xf32, #tpu.memory_space<vmem>>, %arg7: memref<256x128xbf16, #tpu.memory_space<vmem>>, %arg8: memref<1x128xf32, #tpu.memory_space<vmem>>, %arg9: memref<16x128xf32, #tpu.memory_space<vmem>>) attributes {dimension_semantics = [#tpu.dimension_semantics<parallel>], iteration_bounds = array<i64: 2>, scalar_prefetch = 0 : i64, scratch_operands = 0 : i64, tpu.core_type = #tpu.core_type<tc>, window_params = [{transform_indices = @transform_0, window_bounds = array<i64: 1, 1>}, {transform_indices = @transform_1, window_bounds = array<i64: 16, 128>}, {transform_indices = @transform_2, window_bounds = array<i64: 16, 128>}, {pipeline_mode = #tpu.pipeline_mode<synchronous>, transform_indices = @transform_3, window_bounds = array<i64: 128, 256>}, {pipeline_mode = #tpu.pipeline_mode<synchronous>, transform_indices = @transform_4, window_bounds = array<i64: 1, 256>}, {pipeline_mode = #tpu.pipeline_mode<synchronous>, transform_indices = @transform_5, window_bounds = array<i64: 1, 256>}, {pipeline_mode = #tpu.pipeline_mode<synchronous>, transform_indices = @transform_6, window_bounds = array<i64: 256, 128>}, {pipeline_mode = #tpu.pipeline_mode<synchronous>, transform_indices = @transform_7, window_bounds = array<i64: 1, 128>}, {transform_indices = @transform_8, window_bounds = array<i64: 16, 128>}]} {
    %c0 = arith.constant 0 : index
    %c0_0 = arith.constant 0 : index
    %0 = memref.load %arg1[%c0, %c0_0] : memref<1x1xf32, #tpu.memory_space<smem>>
    %c0_1 = arith.constant 0 : index
    %c0_2 = arith.constant 0 : index
    %1 = vector.load %arg5[%c0_1, %c0_2] : memref<1x256xf32, #tpu.memory_space<vmem>>, vector<1x256xf32>
    %c0_3 = arith.constant 0 : index
    %c0_4 = arith.constant 0 : index
    %2 = vector.load %arg6[%c0_3, %c0_4] : memref<1x256xf32, #tpu.memory_space<vmem>>, vector<1x256xf32>
    %3 = vector.broadcast %0 : f32 to vector<1x256xf32>
    %4 = arith.mulf %3, %2 : vector<1x256xf32>
    %5 = arith.addf %1, %4 : vector<1x256xf32>
    %c0_5 = arith.constant 0 : index
    %c0_6 = arith.constant 0 : index
    %6 = vector.load %arg2[%c0_5, %c0_6] : memref<16x128xbf16, #tpu.memory_space<vmem>>, vector<16x128xbf16>
    %c0_7 = arith.constant 0 : index
    %c0_8 = arith.constant 0 : index
    %7 = vector.load %arg4[%c0_7, %c0_8] : memref<128x256xbf16, #tpu.memory_space<vmem>>, vector<128x256xbf16>
    %cst = arith.constant dense<0.000000e+00> : vector<16x256xf32>
    %8 = tpu.matmul %6, %7, %cst {dimension_numbers = #tpu.dot_dimension_numbers<[1], [0], [0], [1], [0, 0, 1, 1], [], []>} : vector<16x128xbf16>, vector<128x256xbf16>, vector<16x256xf32> -> vector<16x256xf32>
    %9 = vector.broadcast %5 : vector<1x256xf32> to vector<16x256xf32>
    %10 = arith.addf %8, %9 : vector<16x256xf32>
    %11 = arith.mulf %10, %10 : vector<16x256xf32>
    %12 = arith.mulf %10, %11 : vector<16x256xf32>
    %cst_9 = arith.constant 4.471500e-02 : f32
    %13 = vector.broadcast %cst_9 : f32 to vector<16x256xf32>
    %14 = arith.mulf %13, %12 : vector<16x256xf32>
    %15 = arith.addf %10, %14 : vector<16x256xf32>
    %cst_10 = arith.constant 0.797884583 : f32
    %16 = vector.broadcast %cst_10 : f32 to vector<16x256xf32>
    %17 = arith.mulf %16, %15 : vector<16x256xf32>
    %18 = math.tanh %17 : vector<16x256xf32>
    %cst_11 = arith.constant 1.000000e+00 : f32
    %19 = vector.broadcast %cst_11 : f32 to vector<16x256xf32>
    %20 = arith.addf %19, %18 : vector<16x256xf32>
    %cst_12 = arith.constant 5.000000e-01 : f32
    %21 = vector.broadcast %cst_12 : f32 to vector<16x256xf32>
    %22 = arith.mulf %21, %20 : vector<16x256xf32>
    %23 = arith.mulf %10, %22 : vector<16x256xf32>
    %24 = arith.truncf %23 : vector<16x256xf32> to vector<16x256xbf16>
    %c0_13 = arith.constant 0 : index
    %c0_14 = arith.constant 0 : index
    %25 = vector.load %arg7[%c0_13, %c0_14] : memref<256x128xbf16, #tpu.memory_space<vmem>>, vector<256x128xbf16>
    %cst_15 = arith.constant dense<0.000000e+00> : vector<16x128xf32>
    %26 = tpu.matmul %24, %25, %cst_15 {dimension_numbers = #tpu.dot_dimension_numbers<[1], [0], [0], [1], [0, 0, 1, 1], [], []>} : vector<16x256xbf16>, vector<256x128xbf16>, vector<16x128xf32> -> vector<16x128xf32>
    %c0_16 = arith.constant 0 : index
    %c0_17 = arith.constant 0 : index
    %27 = vector.load %arg8[%c0_16, %c0_17] : memref<1x128xf32, #tpu.memory_space<vmem>>, vector<1x128xf32>
    %28 = vector.broadcast %27 : vector<1x128xf32> to vector<16x128xf32>
    %29 = arith.addf %26, %28 : vector<16x128xf32>
    %c0_18 = arith.constant 0 : index
    %c0_19 = arith.constant 0 : index
    %30 = vector.load %arg3[%c0_18, %c0_19] : memref<16x128xbf16, #tpu.memory_space<vmem>>, vector<16x128xbf16>
    %31 = arith.extf %30 : vector<16x128xbf16> to vector<16x128xf32>
    %32 = arith.mulf %29, %31 : vector<16x128xf32>
    %c0_20 = arith.constant 0 : index
    %c0_21 = arith.constant 0 : index
    %33 = vector.load %arg9[%c0_20, %c0_21] : memref<16x128xf32, #tpu.memory_space<vmem>>, vector<16x128xf32>
    tpu.vector_store %arg9[%c0_20, %c0_21], %32 {strides = array<i32>} : memref<16x128xf32, #tpu.memory_space<vmem>>, vector<16x128xf32>,
    return
  }
  func.func @transform_0(%arg0: i32) -> (i32, i32) {
    %c0_i32 = arith.constant 0 : i32
    %c0_i32_0 = arith.constant 0 : i32
    %c0_i32_1 = arith.constant 0 : i32
    return %c0_i32, %c0_i32_0 : i32, i32
  }
  func.func @transform_1(%arg0: i32) -> (i32, i32) {
    %c0_i32 = arith.constant 0 : i32
    %c0_i32_0 = arith.constant 0 : i32
    return %arg0, %c0_i32 : i32, i32
  }
  func.func @transform_2(%arg0: i32) -> (i32, i32) {
    %c0_i32 = arith.constant 0 : i32
    %c0_i32_0 = arith.constant 0 : i32
    return %arg0, %c0_i32 : i32, i32
  }
  func.func @transform_3(%arg0: i32) -> (i32, i32) {
    %c0_i32 = arith.constant 0 : i32
    %c0_i32_0 = arith.constant 0 : i32
    %c0_i32_1 = arith.constant 0 : i32
    return %c0_i32, %c0_i32_0 : i32, i32
  }
  func.func @transform_4(%arg0: i32) -> (i32, i32) {
    %c0_i32 = arith.constant 0 : i32
    %c0_i32_0 = arith.constant 0 : i32
    %c0_i32_1 = arith.constant 0 : i32
    return %c0_i32, %c0_i32_0 : i32, i32
  }
  func.func @transform_5(%arg0: i32) -> (i32, i32) {
    %c0_i32 = arith.constant 0 : i32
    %c0_i32_0 = arith.constant 0 : i32
    %c0_i32_1 = arith.constant 0 : i32
    return %c0_i32, %c0_i32_0 : i32, i32
  }
  func.func @transform_6(%arg0: i32) -> (i32, i32) {
    %c0_i32 = arith.constant 0 : i32
    %c0_i32_0 = arith.constant 0 : i32
    %c0_i32_1 = arith.constant 0 : i32
    return %c0_i32, %c0_i32_0 : i32, i32
  }
  func.func @transform_7(%arg0: i32) -> (i32, i32) {
    %c0_i32 = arith.constant 0 : i32
    %c0_i32_0 = arith.constant 0 : i32
    %c0_i32_1 = arith.constant 0 : i32
    return %c0_i32, %c0_i32_0 : i32, i32
  }
  func.func @transform_8(%arg0: i32) -> (i32, i32) {
    %c0_i32 = arith.constant 0 : i32
    %c0_i32_0 = arith.constant 0 : i32
    return %arg0, %c0_i32 : i32, i32
  }
}

</mosaic_0001>

<llo_original>
// kernel: tpu_custom_call.1
$region0: #{tpu_custom_call.1}
  #allocation0 [shape = 'u32[]', space=smem, size = 0x4, offset = 0x4, fixed_abs, tag = 'smem constant byte address 0x4 - core index']
  #allocation1 [shape = 'u32[144,128]{1,0:T(1,128)}', space=vmem, size = 0x12000, scoped, tag = 'internal scratch']
  #allocation2 [shape = 'f32[1,1]{1,0:T(1,128)S(6)}', space=smem, size = 0x200, scoped, tag = 'scoped memory for tpu_custom_call.1']
  %s0 = inlined_call_operand.<no memory space> [shape: f32[1,1], index: 0, kind: input, shape index: {}]
  %s1 = inlined_call_operand.hbm [shape: bf16[32,128], index: 1, kind: input, shape index: {}]
  %s2 = inlined_call_operand.hbm [shape: bf16[32,128], index: 2, kind: input, shape index: {}]
  %s3 = inlined_call_operand.hbm [shape: bf16[128,256], index: 3, kind: input, shape index: {}]
  %s4 = inlined_call_operand.vmem [shape: f32[1,256], index: 4, kind: input, shape index: {}]
  %s5 = inlined_call_operand.vmem [shape: f32[1,256], index: 5, kind: input, shape index: {}]
  %s6 = inlined_call_operand.hbm [shape: bf16[256,128], index: 6, kind: input, shape index: {}]
  %s7 = inlined_call_operand.vmem [shape: f32[1,128], index: 7, kind: input, shape index: {}]
  %s8 = inlined_call_operand.hbm [shape: f32[32,128], index: 8, kind: output, shape index: {}]
  %s9 = sld [smem:[#allocation0]]
  $region81: #{tpu_custom_call.1} parent=0
    _
  %s11 = ssub.s32 1, %s9
  %s12 = scalar_select 0, %s11, %s9
  %13 = sst [smem:[#allocation2]] %s0
  $region1: #{tpu_custom_call.1} parent=0
    #allocation3 [shape = 'u8[8192]{0}', space=vmem, size = 0x2000, scoped, tag = 'input window, operand 1']
    #allocation4 [shape = 's32[2]{0}', space=sflag, size = 0x8, scoped, tag = 'scoped memory for tpu_custom_call.1']
    #allocation5 [shape = 's32[2]{0}', space=sflag, size = 0x8, scoped, tag = 'scoped memory for tpu_custom_call.1']
    #allocation6 [shape = 'u8[8192]{0}', space=vmem, size = 0x2000, scoped, tag = 'input window, operand 2']
    #allocation7 [shape = 's32[2]{0}', space=sflag, size = 0x8, scoped, tag = 'scoped memory for tpu_custom_call.1']
    #allocation8 [shape = 'u8[65536]{0}', space=vmem, size = 0x10000, scoped, tag = 'input window, operand 3, single buffered']
    #allocation9 [shape = 'u8[65536]{0}', space=vmem, size = 0x10000, scoped, tag = 'input window, operand 6, single buffered']
    #allocation10 [shape = 's32[1]{0}', space=sflag, size = 0x4, scoped, tag = 'scoped memory for tpu_custom_call.1']
    #allocation11 [shape = 'u8[16384]{0}', space=vmem, size = 0x4000, scoped, tag = 'output window, operand 0']
    %14 = vsyncpa [#allocation4], 0
    %s15 = scalar_lea.sflag [#allocation4], 1
    %16 = vsyncpa %s15, 0
    %17 = vsyncpa [#allocation7], 0
    %s18 = scalar_lea.sflag [#allocation7], 1
    %19 = vsyncpa %s18, 0
    %20 = vsyncpa [#allocation10], 0
    %21 = vsyncpa [#allocation5], 0
    %s22 = scalar_lea.sflag [#allocation5], 1
    %23 = vsyncpa %s22, 0
    loop: start=0, step=1, limit=4
    $region2: #{tpu_custom_call.1} parent=1 // loop_pre_header
      _
    $region3: #{tpu_custom_call.1} parent=1 // loop_header
      %s25 = sphi 0, %s29
      %p26 = scmp.ge.s32.totalorder %s25, 4
      %s33 = sphi 0, %s33
      %s35 = sphi 0, %s33
      %s36 = sphi 0, %s35
      %s50 = sphi 0, %s36
      %s56 = sphi 0, %s58
      %s59 = sphi 0, %s56
      %s60 = sphi 0, %s59
      %s76 = sphi 0, %s60
      %s82 = sphi 0, %s84
      %s85 = sphi 0, %s82
      %s86 = sphi 0, %s85
      %s102 = sphi 0, %s86
      %s106 = sphi 0, %s106
      %s108 = sphi 0, %s106
      %s109 = sphi 0, %s108
      %s123 = sphi 0, %s109
      %s127 = sphi 0, %s127
      %s129 = sphi 0, %s127
      %s130 = sphi 0, %s129
      %s144 = sphi 0, %s130
      %s148 = sphi 0, %s148
      %s150 = sphi 0, %s148
      %s151 = sphi 0, %s150
      %s165 = sphi 0, %s151
      %s169 = sphi 0, %s169
      %s171 = sphi 0, %s169
      %s172 = sphi 0, %s171
      %s186 = sphi 0, %s172
      %s190 = sphi 0, %s190
      %s192 = sphi 0, %s190
      %s193 = sphi 0, %s192
      %s207 = sphi 0, %s193
      %s213 = sphi 0, %s215
      %s216 = sphi 0, %s213
      %s217 = sphi 0, %s216
      %s233 = sphi 0, %s217
    $region4: #{tpu_custom_call.1} parent=1 // loop_header_branch
      %28 = sbr.rel (%p26) target = $region8
    $region5: #{tpu_custom_call.1} parent=1 // loop_body
      %s30 = ssub.s32 %s25, 1
      %s31 = ssub.s32 %s25, 2
      %s32 = sadd.s32 %s25, 1
      %s34 = sadd.s32 %s33, 1
      %p37 = scmp.eq.s32.totalorder %s25, 1
      %p38 = scmp.ne.s32.totalorder %s33, %s35
      %p39 = scmp.eq.s32.totalorder %s25, 0
      %p40 = por %p38, %p39
      %p41 = scmp.ne.s32.totalorder %s33, %s35
      %p42 = scmp.eq.s32.totalorder %s30, 1
      %p43 = por %p41, %p42
      %p44 = scmp.ne.s32.totalorder %s35, %s36
      %p45 = scmp.eq.s32.totalorder %s30, 0
      %p46 = por %p44, %p45
      %p47 = scmp.ne.s32.totalorder %s35, %s36
      %p48 = scmp.eq.s32.totalorder %s31, 1
      %p49 = por %p47, %p48
      %p51 = scmp.ne.s32.totalorder %s36, %s50
      %p52 = scmp.eq.s32.totalorder %s31, 0
      %p53 = por %p51, %p52
      %s54 = ssub.s32 %s25, %s32
      %p55 = scmp.eq.s32.totalorder %s54, 0
      %s57 = sadd.s32 %s56, 1
      %s58 = scalar_select %p55, %s56, %s57
      %p61 = pneg %p55
      %p62 = scmp.eq.s32.totalorder %s25, 1
      %p63 = por %p61, %p62
      %p64 = scmp.ne.s32.totalorder %s56, %s59
      %p65 = scmp.eq.s32.totalorder %s25, 0
      %p66 = por %p64, %p65
      %p67 = scmp.ne.s32.totalorder %s56, %s59
      %p68 = scmp.eq.s32.totalorder %s30, 1
      %p69 = por %p67, %p68
      %p70 = scmp.ne.s32.totalorder %s59, %s60
      %p71 = scmp.eq.s32.totalorder %s30, 0
      %p72 = por %p70, %p71
      %p73 = scmp.ne.s32.totalorder %s59, %s60
      %p74 = scmp.eq.s32.totalorder %s31, 1
      %p75 = por %p73, %p74
      %p77 = scmp.ne.s32.totalorder %s60, %s76
      %p78 = scmp.eq.s32.totalorder %s31, 0
      %p79 = por %p77, %p78
      %s80 = ssub.s32 %s25, %s32
      %p81 = scmp.eq.s32.totalorder %s80, 0
      %s83 = sadd.s32 %s82, 1
      %s84 = scalar_select %p81, %s82, %s83
      %p87 = pneg %p81
      %p88 = scmp.eq.s32.totalorder %s25, 1
      %p89 = por %p87, %p88
      %p90 = scmp.ne.s32.totalorder %s82, %s85
      %p91 = scmp.eq.s32.totalorder %s25, 0
      %p92 = por %p90, %p91
      %p93 = scmp.ne.s32.totalorder %s82, %s85
      %p94 = scmp.eq.s32.totalorder %s30, 1
      %p95 = por %p93, %p94
      %p96 = scmp.ne.s32.totalorder %s85, %s86
      %p97 = scmp.eq.s32.totalorder %s30, 0
      %p98 = por %p96, %p97
      %p99 = scmp.ne.s32.totalorder %s85, %s86
      %p100 = scmp.eq.s32.totalorder %s31, 1
      %p101 = por %p99, %p100
      %p103 = scmp.ne.s32.totalorder %s86, %s102
      %p104 = scmp.eq.s32.totalorder %s31, 0
      %p105 = por %p103, %p104
      %s107 = sadd.s32 %s106, 1
      %p110 = scmp.eq.s32.totalorder %s25, 1
      %p111 = scmp.ne.s32.totalorder %s106, %s108
      %p112 = scmp.eq.s32.totalorder %s25, 0
      %p113 = por %p111, %p112
      %p114 = scmp.ne.s32.totalorder %s106, %s108
      %p115 = scmp.eq.s32.totalorder %s30, 1
      %p116 = por %p114, %p115
      %p117 = scmp.ne.s32.totalorder %s108, %s109
      %p118 = scmp.eq.s32.totalorder %s30, 0
      %p119 = por %p117, %p118
      %p120 = scmp.ne.s32.totalorder %s108, %s109
      %p121 = scmp.eq.s32.totalorder %s31, 1
      %p122 = por %p120, %p121
      %p124 = scmp.ne.s32.totalorder %s109, %s123
      %p125 = scmp.eq.s32.totalorder %s31, 0
      %p126 = por %p124, %p125
      %s128 = sadd.s32 %s127, 1
      %p131 = scmp.eq.s32.totalorder %s25, 1
      %p132 = scmp.ne.s32.totalorder %s127, %s129
      %p133 = scmp.eq.s32.totalorder %s25, 0
      %p134 = por %p132, %p133
      %p135 = scmp.ne.s32.totalorder %s127, %s129
      %p136 = scmp.eq.s32.totalorder %s30, 1
      %p137 = por %p135, %p136
      %p138 = scmp.ne.s32.totalorder %s129, %s130
      %p139 = scmp.eq.s32.totalorder %s30, 0
      %p140 = por %p138, %p139
      %p141 = scmp.ne.s32.totalorder %s129, %s130
      %p142 = scmp.eq.s32.totalorder %s31, 1
      %p143 = por %p141, %p142
      %p145 = scmp.ne.s32.totalorder %s130, %s144
      %p146 = scmp.eq.s32.totalorder %s31, 0
      %p147 = por %p145, %p146
      %s149 = sadd.s32 %s148, 1
      %p152 = scmp.eq.s32.totalorder %s25, 1
      %p153 = scmp.ne.s32.totalorder %s148, %s150
      %p154 = scmp.eq.s32.totalorder %s25, 0
      %p155 = por %p153, %p154
      %p156 = scmp.ne.s32.totalorder %s148, %s150
      %p157 = scmp.eq.s32.totalorder %s30, 1
      %p158 = por %p156, %p157
      %p159 = scmp.ne.s32.totalorder %s150, %s151
      %p160 = scmp.eq.s32.totalorder %s30, 0
      %p161 = por %p159, %p160
      %p162 = scmp.ne.s32.totalorder %s150, %s151
      %p163 = scmp.eq.s32.totalorder %s31, 1
      %p164 = por %p162, %p163
      %p166 = scmp.ne.s32.totalorder %s151, %s165
      %p167 = scmp.eq.s32.totalorder %s31, 0
      %p168 = por %p166, %p167
      %s170 = sadd.s32 %s169, 1
      %p173 = scmp.eq.s32.totalorder %s25, 1
      %p174 = scmp.ne.s32.totalorder %s169, %s171
      %p175 = scmp.eq.s32.totalorder %s25, 0
      %p176 = por %p174, %p175
      %p177 = scmp.ne.s32.totalorder %s169, %s171
      %p178 = scmp.eq.s32.totalorder %s30, 1
      %p179 = por %p177, %p178
      %p180 = scmp.ne.s32.totalorder %s171, %s172
      %p181 = scmp.eq.s32.totalorder %s30, 0
      %p182 = por %p180, %p181
      %p183 = scmp.ne.s32.totalorder %s171, %s172
      %p184 = scmp.eq.s32.totalorder %s31, 1
      %p185 = por %p183, %p184
      %p187 = scmp.ne.s32.totalorder %s172, %s186
      %p188 = scmp.eq.s32.totalorder %s31, 0
      %p189 = por %p187, %p188
      %s191 = sadd.s32 %s190, 1
      %p194 = scmp.eq.s32.totalorder %s25, 1
      %p195 = scmp.ne.s32.totalorder %s190, %s192
      %p196 = scmp.eq.s32.totalorder %s25, 0
      %p197 = por %p195, %p196
      %p198 = scmp.ne.s32.totalorder %s190, %s192
      %p199 = scmp.eq.s32.totalorder %s30, 1
      %p200 = por %p198, %p199
      %p201 = scmp.ne.s32.totalorder %s192, %s193
      %p202 = scmp.eq.s32.totalorder %s30, 0
      %p203 = por %p201, %p202
      %p204 = scmp.ne.s32.totalorder %s192, %s193
      %p205 = scmp.eq.s32.totalorder %s31, 1
      %p206 = por %p204, %p205
      %p208 = scmp.ne.s32.totalorder %s193, %s207
      %p209 = scmp.eq.s32.totalorder %s31, 0
      %p210 = por %p208, %p209
      %s211 = ssub.s32 %s25, %s32
      %p212 = scmp.eq.s32.totalorder %s211, 0
      %s214 = sadd.s32 %s213, 1
      %s215 = scalar_select %p212, %s213, %s214
      %p218 = pneg %p212
      %p219 = scmp.eq.s32.totalorder %s25, 1
      %p220 = por %p218, %p219
      %p221 = scmp.ne.s32.totalorder %s213, %s216
      %p222 = scmp.eq.s32.totalorder %s25, 0
      %p223 = por %p221, %p222
      %p224 = scmp.ne.s32.totalorder %s213, %s216
      %p225 = scmp.eq.s32.totalorder %s30, 1
      %p226 = por %p224, %p225
      %p227 = scmp.ne.s32.totalorder %s216, %s217
      %p228 = scmp.eq.s32.totalorder %s30, 0
      %p229 = por %p227, %p228
      %p230 = scmp.ne.s32.totalorder %s216, %s217
      %p231 = scmp.eq.s32.totalorder %s31, 1
      %p232 = por %p230, %p231
      %p234 = scmp.ne.s32.totalorder %s217, %s233
      %p235 = scmp.eq.s32.totalorder %s31, 0
      %p236 = por %p234, %p235
      %p237 = scmp.le.s32.totalorder 1, %s25
      %p238 = scmp.lt.s32.totalorder %s25, 3
      %p239 = pnand %p237, %p238
      %p240 = pneg %p239
      // Predicated region
      $region9: #{tpu_custom_call.1} parent=5 // pred_check
        _
      $region10: #{tpu_custom_call.1} parent=5 // pred_check_branch
        %242 = sbr.rel (%p239) target = $region12
      $region11: #{tpu_custom_call.1} parent=5 // pred_region
        %s243 = ssub.s32 %s25, 1
        // Predicated region
        $region13: #{tpu_custom_call.1} parent=11 // pred_check
          %p244 = pneg %p46
        $region14: #{tpu_custom_call.1} parent=11 // pred_check_branch
          %246 = sbr.rel (%p244) target = $region16
        $region15: #{tpu_custom_call.1} parent=11 // pred_region
          _
        $region16: #{tpu_custom_call.1} parent=11 // pred_fallthru
          _
        // Predicated region
        $region17: #{tpu_custom_call.1} parent=11 // pred_check
          %p247 = pneg %p119
        $region18: #{tpu_custom_call.1} parent=11 // pred_check_branch
          %249 = sbr.rel (%p247) target = $region20
        $region19: #{tpu_custom_call.1} parent=11 // pred_region
          %s251 = ssub.s32 2048, 2048
          %252 = vsyncadd [#allocation7], %s251
          %s253 = sshll.u32 [#allocation8], 4
          %s254 = int_to_ptr.vmem [resolvable:$true] %s253
          %259 = dma.hbm_to_vmem [thread:$0]  %s3, 2048, %s254, [#allocation7], 128, 128, 8
        $region20: #{tpu_custom_call.1} parent=11 // pred_fallthru
          _
        // Predicated region
        $region21: #{tpu_custom_call.1} parent=11 // pred_check
          %p260 = pneg %p140
        $region22: #{tpu_custom_call.1} parent=11 // pred_check_branch
          %262 = sbr.rel (%p260) target = $region24
        $region23: #{tpu_custom_call.1} parent=11 // pred_region
          _
        $region24: #{tpu_custom_call.1} parent=11 // pred_fallthru
          _
        // Predicated region
        $region25: #{tpu_custom_call.1} parent=11 // pred_check
          %p263 = pneg %p161
        $region26: #{tpu_custom_call.1} parent=11 // pred_check_branch
          %265 = sbr.rel (%p263) target = $region28
        $region27: #{tpu_custom_call.1} parent=11 // pred_region
          _
        $region28: #{tpu_custom_call.1} parent=11 // pred_fallthru
          _
        // Predicated region
        $region29: #{tpu_custom_call.1} parent=11 // pred_check
          %p266 = pneg %p182
        $region30: #{tpu_custom_call.1} parent=11 // pred_check_branch
          %268 = sbr.rel (%p266) target = $region32
        $region31: #{tpu_custom_call.1} parent=11 // pred_region
          %s270 = ssub.s32 2048, 2048
          %271 = vsyncadd [#allocation10], %s270
          %s272 = sshll.u32 [#allocation9], 4
          %s273 = int_to_ptr.vmem [resolvable:$true] %s272
          %278 = dma.hbm_to_vmem [thread:$0]  %s6, 2048, %s273, [#allocation10], 64, 64, 4
        $region32: #{tpu_custom_call.1} parent=11 // pred_fallthru
          _
        // Predicated region
        $region33: #{tpu_custom_call.1} parent=11 // pred_check
          %p279 = pneg %p203
        $region34: #{tpu_custom_call.1} parent=11 // pred_check_branch
          %281 = sbr.rel (%p279) target = $region36
        $region35: #{tpu_custom_call.1} parent=11 // pred_region
          _
        $region36: #{tpu_custom_call.1} parent=11 // pred_fallthru
          _
      $region12: #{tpu_custom_call.1} parent=5 // pred_fallthru
        _
      %p282 = scmp.lt.s32.totalorder %s25, 2
      // Predicated region
      $region37: #{tpu_custom_call.1} parent=5 // pred_check
        %p283 = pneg %p282
      $region38: #{tpu_custom_call.1} parent=5 // pred_check_branch
        %285 = sbr.rel (%p283) target = $region40
      $region39: #{tpu_custom_call.1} parent=5 // pred_region
        // Predicated region
        $region41: #{tpu_custom_call.1} parent=39 // pred_check
          %p286 = pneg %p66
        $region42: #{tpu_custom_call.1} parent=39 // pred_check_branch
          %288 = sbr.rel (%p286) target = $region44
        $region43: #{tpu_custom_call.1} parent=39 // pred_region
          %s289 = sand.u32 %s56, 1
          %s290 = scalar_lea.sflag [#allocation4], %s289
          %s291 = sand.u32 %s56, 1
          %s292 = smul.addr %s291, 8
          %s293 = scalar_lea.vmem [#allocation3], %s292
          %s294 = smul.u32 2, %s25
          %s296 = ssub.s32 128, 128
          %297 = vsyncadd %s290, %s296
          %s298 = smul.addr %s294, 64
          %s299 = scalar_lea.hbm %s1, %s298
          %s300 = sshll.u32 %s293, 4
          %s301 = int_to_ptr.vmem [resolvable:$true] %s300
          %306 = dma.hbm_to_vmem [thread:$0]  %s299, 128, %s301, %s290, 64, 64, 4
        $region44: #{tpu_custom_call.1} parent=39 // pred_fallthru
          _
        // Predicated region
        $region45: #{tpu_custom_call.1} parent=39 // pred_check
          %p307 = pneg %p92
        $region46: #{tpu_custom_call.1} parent=39 // pred_check_branch
          %309 = sbr.rel (%p307) target = $region48
        $region47: #{tpu_custom_call.1} parent=39 // pred_region
          %s310 = sand.u32 %s25, 1
          %s311 = scalar_lea.sflag [#allocation7], %s310
          %s312 = sand.u32 %s82, 1
          %s313 = smul.addr %s312, 8
          %s314 = scalar_lea.vmem [#allocation6], %s313
          %s315 = smul.u32 2, %s25
          %s317 = ssub.s32 128, 128
          %318 = vsyncadd %s311, %s317
          %s319 = smul.addr %s315, 64
          %s320 = scalar_lea.hbm %s2, %s319
          %s321 = sshll.u32 %s314, 4
          %s322 = int_to_ptr.vmem [resolvable:$true] %s321
          %327 = dma.hbm_to_vmem [thread:$0]  %s320, 128, %s322, %s311, 64, 64, 4
        $region48: #{tpu_custom_call.1} parent=39 // pred_fallthru
          _
      $region40: #{tpu_custom_call.1} parent=5 // pred_fallthru
        _
      %p328 = scmp.le.s32.totalorder 1, %s25
      %p329 = scmp.lt.s32.totalorder %s25, 3
      %p330 = pnand %p328, %p329
      %p331 = pneg %p330
      // Predicated region
      $region49: #{tpu_custom_call.1} parent=5 // pred_check
        _
      $region50: #{tpu_custom_call.1} parent=5 // pred_check_branch
        %333 = sbr.rel (%p330) target = $region52
      $region51: #{tpu_custom_call.1} parent=5 // pred_region
        %s334 = ssub.s32 %s25, 1
        %s335 = sand.u32 %s59, 1
        %s336 = scalar_lea.sflag [#allocation4], %s335
        %s337 = sand.u32 %s59, 1
        %s338 = smul.addr %s337, 8
        %s339 = scalar_lea.vmem [#allocation3], %s338
        // Predicated region
        $region53: #{tpu_custom_call.1} parent=51 // pred_check
          %p340 = pneg %p72
        $region54: #{tpu_custom_call.1} parent=51 // pred_check_branch
          %342 = sbr.rel (%p340) target = $region56
        $region55: #{tpu_custom_call.1} parent=51 // pred_region
          %343 = dma.done %s336, 128
        $region56: #{tpu_custom_call.1} parent=51 // pred_fallthru
          _
        %s344 = sand.u32 %s30, 1
        %s345 = scalar_lea.sflag [#allocation7], %s344
        %s346 = sand.u32 %s85, 1
        %s347 = smul.addr %s346, 8
        %s348 = scalar_lea.vmem [#allocation6], %s347
        // Predicated region
        $region57: #{tpu_custom_call.1} parent=51 // pred_check
          %p349 = pneg %p98
        $region58: #{tpu_custom_call.1} parent=51 // pred_check_branch
          %351 = sbr.rel (%p349) target = $region60
        $region59: #{tpu_custom_call.1} parent=51 // pred_region
          %352 = dma.done %s345, 128
        $region60: #{tpu_custom_call.1} parent=51 // pred_fallthru
          _
        // Predicated region
        $region61: #{tpu_custom_call.1} parent=51 // pred_check
          %p353 = pneg %p119
        $region62: #{tpu_custom_call.1} parent=51 // pred_check_branch
          %355 = sbr.rel (%p353) target = $region64
        $region63: #{tpu_custom_call.1} parent=51 // pred_region
          %356 = dma.done [#allocation7], 2048
        $region64: #{tpu_custom_call.1} parent=51 // pred_fallthru
          _
        // Predicated region
        $region65: #{tpu_custom_call.1} parent=51 // pred_check
          %p357 = pneg %p182
        $region66: #{tpu_custom_call.1} parent=51 // pred_check_branch
          %359 = sbr.rel (%p357) target = $region68
        $region67: #{tpu_custom_call.1} parent=51 // pred_region
          %360 = dma.done [#allocation10], 2048
        $region68: #{tpu_custom_call.1} parent=51 // pred_fallthru
          _
        %p361 = pneg %p46
        %p362 = pneg %p43
        %s363 = sand.u32 %s59, 1
        %s364 = scalar_lea.sflag [#allocation4], %s363
        %s365 = sand.u32 %s59, 1
        %s366 = smul.addr %s365, 8
        %s367 = scalar_lea.vmem [#allocation3], %s366
        %p368 = pneg %p72
        %p369 = pneg %p69
        %s370 = sand.u32 %s30, 1
        %s371 = scalar_lea.sflag [#allocation7], %s370
        %s372 = sand.u32 %s85, 1
        %s373 = smul.addr %s372, 8
        %s374 = scalar_lea.vmem [#allocation6], %s373
        %p375 = pneg %p98
        %p376 = pneg %p95
        %p377 = pneg %p119
        %p378 = pneg %p116
        %p379 = pneg %p140
        %p380 = pneg %p137
        %p381 = pneg %p161
        %p382 = pneg %p158
        %p383 = pneg %p182
        %p384 = pneg %p179
        %p385 = pneg %p203
        %p386 = pneg %p200
        %p387 = pneg %p229
        %p388 = pneg %p226
        %s389 = sand.u32 %s216, 1
        %s390 = scalar_lea.sflag [#allocation5], %s389
        %s391 = sand.u32 %s216, 1
        %s392 = smul.addr %s391, 16
        %s393 = scalar_lea.vmem [#allocation11], %s392
        %s394 = smul.u32 2, %s30
        %s395 = smul.u32 2, %s30
        %s396 = smul.u32 2, %s30
        %s398 = sld [smem:[#allocation2]]
        %v399 = vld [vmem:[%s4] sm:$0x3]
        %v400 = vld [vmem:[%s5] sm:$0x3]
        %v401 = vstv %s398
        %v402 = vmul.f32 %v401, %v400
        %v403 = vadd.f32 %v399, %v402
        %v404 = vld [vmem:[%s339] sm:$0xf]
        %v405 = vld [vmem:[%s339 + $0x4] sm:$0xf]
        %v406 = vld [vmem:[#allocation8] sm:$0xff]
        %v407 = vld [vmem:[#allocation8 + $0x8] sm:$0xff]
        %v408 = vld [vmem:[#allocation8 + $0x10] sm:$0xff]
        %v409 = vld [vmem:[#allocation8 + $0x18] sm:$0xff]
        %v410 = vld [vmem:[#allocation8 + $0x20] sm:$0xff]
        %v411 = vld [vmem:[#allocation8 + $0x28] sm:$0xff]
        %v412 = vld [vmem:[#allocation8 + $0x30] sm:$0xff]
        %v413 = vld [vmem:[#allocation8 + $0x38] sm:$0xff]
        %v414 = vld [vmem:[#allocation8 + $0x40] sm:$0xff]
        %v415 = vld [vmem:[#allocation8 + $0x48] sm:$0xff]
        %v416 = vld [vmem:[#allocation8 + $0x50] sm:$0xff]
        %v417 = vld [vmem:[#allocation8 + $0x58] sm:$0xff]
        %v418 = vld [vmem:[#allocation8 + $0x60] sm:$0xff]
        %v419 = vld [vmem:[#allocation8 + $0x68] sm:$0xff]
        %v420 = vld [vmem:[#allocation8 + $0x70] sm:$0xff]
        %v421 = vld [vmem:[#allocation8 + $0x78] sm:$0xff]
        %v423 = vlaneseq
        %v424 = vshrl.u32 %v423, 7
        %v425 = vsub.s32 0, %v424
        %v426 = vrot.slane %v403, %v425
        %v427 = vlaneseq
        %v428 = vshrl.u32 %v427, 7
        %v429 = vsub.s32 1, %v428
        %v430 = vrot.slane %v403, %v429
        %v435 = vunpack.c.l.b16 %v404
        %v436 = vunpack.c.l.b16 %v405
        %v437 = vpack.c.b16 %v436, %v435
        %v455 = vunpack.c.l.b16 %v406
        %v456 = vunpack.c.h.b16 %v406
        %v457 = vunpack.c.l.b16 %v407
        %v458 = vunpack.c.h.b16 %v407
        %v459 = vunpack.c.l.b16 %v408
        %v460 = vunpack.c.h.b16 %v408
        %v461 = vunpack.c.l.b16 %v409
        %v462 = vunpack.c.h.b16 %v409
        %v463 = vunpack.c.l.b16 %v410
        %v464 = vunpack.c.h.b16 %v410
        %v465 = vunpack.c.l.b16 %v411
        %v466 = vunpack.c.h.b16 %v411
        %v467 = vunpack.c.l.b16 %v412
        %v468 = vunpack.c.h.b16 %v412
        %v469 = vunpack.c.l.b16 %v413
        %v470 = vunpack.c.h.b16 %v413
        %v471 = vunpack.c.l.b16 %v414
        %v472 = vunpack.c.h.b16 %v414
        %v473 = vunpack.c.l.b16 %v415
        %v474 = vunpack.c.h.b16 %v415
        %v475 = vunpack.c.l.b16 %v416
        %v476 = vunpack.c.h.b16 %v416
        %v477 = vunpack.c.l.b16 %v417
        %v478 = vunpack.c.h.b16 %v417
        %v479 = vunpack.c.l.b16 %v418
        %v480 = vunpack.c.h.b16 %v418
        %v481 = vunpack.c.l.b16 %v419
        %v482 = vunpack.c.h.b16 %v419
        %v483 = vunpack.c.l.b16 %v420
        %v484 = vunpack.c.h.b16 %v420
        %v485 = vunpack.c.l.b16 %v421
        %v486 = vunpack.c.h.b16 %v421
        %v487 = vpack.c.b16 %v457, %v455
        %v488 = vpack.c.b16 %v458, %v456
        %v489 = vpack.c.b16 %v461, %v459
        %v490 = vpack.c.b16 %v462, %v460
        %v491 = vpack.c.b16 %v465, %v463
        %v492 = vpack.c.b16 %v466, %v464
        %v493 = vpack.c.b16 %v469, %v467
        %v494 = vpack.c.b16 %v470, %v468
        %v495 = vpack.c.b16 %v473, %v471
        %v496 = vpack.c.b16 %v474, %v472
        %v497 = vpack.c.b16 %v477, %v475
        %v498 = vpack.c.b16 %v478, %v476
        %v499 = vpack.c.b16 %v481, %v479
        %v500 = vpack.c.b16 %v482, %v480
        %v501 = vpack.c.b16 %v485, %v483
        %v502 = vpack.c.b16 %v486, %v484
        %519 = vmatprep.subr.bf16.mxu0 %v488
        %520 = vmatpush1.bf16.msra.mxu0 %v487
        %521 = vmatprep.subr.bf16.mxu0 %v490
        %522 = vmatpush1.bf16.msra.mxu0 %v489
        %523 = vmatprep.subr.bf16.mxu0 %v492
        %524 = vmatpush1.bf16.msra.mxu0 %v491
        %525 = vmatprep.subr.bf16.mxu0 %v494
        %526 = vmatpush1.bf16.msra.mxu0 %v493
        %527 = vmatprep.subr.bf16.mxu0 %v496
        %528 = vmatpush1.bf16.msra.mxu0 %v495
        %529 = vmatprep.subr.bf16.mxu0 %v498
        %530 = vmatpush1.bf16.msra.mxu0 %v497
        %531 = vmatprep.subr.bf16.mxu0 %v500
        %532 = vmatpush1.bf16.msra.mxu0 %v499
        %533 = vmatprep.subr.bf16.mxu0 %v502
        %534 = vmatpush1.bf16.msra.mxu0 %v501
        %535 = vmatprep.subr.bf16.mxu0 0
        %536 = vmatpush1.bf16.msra.mxu0 0
        %537 = vmatprep.subr.bf16.mxu0 0
        %538 = vmatpush1.bf16.msra.mxu0 0
        %539 = vmatprep.subr.bf16.mxu0 0
        %540 = vmatpush1.bf16.msra.mxu0 0
        %541 = vmatprep.subr.bf16.mxu0 0
        %542 = vmatpush1.bf16.msra.mxu0 0
        %543 = vmatprep.subr.bf16.mxu0 0
        %544 = vmatpush1.bf16.msra.mxu0 0
        %545 = vmatprep.subr.bf16.mxu0 0
        %546 = vmatpush1.bf16.msra.mxu0 0
        %547 = vmatprep.subr.bf16.mxu0 0
        %548 = vmatpush1.bf16.msra.mxu0 0
        %549 = vmatprep.subr.bf16.mxu0 0
        %550 = vmatpush1.bf16.msra.mxu0 0
        %551 = vmatprep.mubr.bf16.mxu0 0
        %552 = vmatmul.mubr.bf16.gmra.mrb[0].mxu0 %v437
        %v553 = vpop.f32.mrb[0].mxu0
        %v554 = vadd.f32 %v426, %v553
        %v555 = vpop.f32.mrb[0].mxu0
        %v556 = vadd.f32 %v430, %v555
        %v557 = vpop.f32.mrb[0].mxu0
        %v558 = vadd.f32 %v426, %v557
        %v559 = vpop.f32.mrb[0].mxu0
        %v560 = vadd.f32 %v430, %v559
        %561 = vdwg.mxu0
        %v562 = vmul.f32 %v554, %v554
        %v563 = vmul.f32 %v556, %v556
        %v564 = vmul.f32 %v558, %v558
        %v565 = vmul.f32 %v560, %v560
        %v566 = vmul.f32 %v554, %v562
        %v567 = vmul.f32 %v556, %v563
        %v568 = vmul.f32 %v558, %v564
        %v569 = vmul.f32 %v560, %v565
        %v570 = vmul.f32 %v566, 0.044715
        %v571 = vmul.f32 %v567, 0.044715
        %v572 = vmul.f32 %v568, 0.044715
        %v573 = vmul.f32 %v569, 0.044715
        %v574 = vadd.f32 %v554, %v570
        %v575 = vadd.f32 %v556, %v571
        %v576 = vadd.f32 %v558, %v572
        %v577 = vadd.f32 %v560, %v573
        %v578 = vmul.f32 %v574, 0.7978846
        %v579 = vmul.f32 %v575, 0.7978846
        %v580 = vmul.f32 %v576, 0.7978846
        %v581 = vmul.f32 %v577, 0.7978846
        %v582 = vtanh.pop %v578
        %v583 = vtanh.pop %v579
        %v584 = vtanh.pop %v580
        %v585 = vtanh.pop %v581
        %v586 = vadd.f32 %v582, 1.0
        %v587 = vadd.f32 %v583, 1.0
        %v588 = vadd.f32 %v584, 1.0
        %v589 = vadd.f32 %v585, 1.0
        %v590 = vmul.f32 %v586, 0.5
        %v591 = vmul.f32 %v587, 0.5
        %v592 = vmul.f32 %v588, 0.5
        %v593 = vmul.f32 %v589, 0.5
        %v594 = vmul.f32 %v554, %v590
        %v595 = vmul.f32 %v556, %v591
        %v596 = vmul.f32 %v558, %v592
        %v597 = vmul.f32 %v560, %v593
        %v598 = vpack.c.bf16 %v596, %v594
        %v599 = vpack.c.bf16 %v597, %v595
        %v600 = vld [vmem:[#allocation9] sm:$0xf]
        %v601 = vld [vmem:[#allocation9 + $0x4] sm:$0xf]
        %v602 = vld [vmem:[#allocation9 + $0x8] sm:$0xf]
        %v603 = vld [vmem:[#allocation9 + $0xc] sm:$0xf]
        %v604 = vld [vmem:[#allocation9 + $0x10] sm:$0xf]
        %v605 = vld [vmem:[#allocation9 + $0x14] sm:$0xf]
        %v606 = vld [vmem:[#allocation9 + $0x18] sm:$0xf]
        %v607 = vld [vmem:[#allocation9 + $0x1c] sm:$0xf]
        %v608 = vld [vmem:[#allocation9 + $0x20] sm:$0xf]
        %v609 = vld [vmem:[#allocation9 + $0x24] sm:$0xf]
        %v610 = vld [vmem:[#allocation9 + $0x28] sm:$0xf]
        %v611 = vld [vmem:[#allocation9 + $0x2c] sm:$0xf]
        %v612 = vld [vmem:[#allocation9 + $0x30] sm:$0xf]
        %v613 = vld [vmem:[#allocation9 + $0x34] sm:$0xf]
        %v614 = vld [vmem:[#allocation9 + $0x38] sm:$0xf]
        %v615 = vld [vmem:[#allocation9 + $0x3c] sm:$0xf]
        %v616 = vld [vmem:[#allocation9 + $0x40] sm:$0xf]
        %v617 = vld [vmem:[#allocation9 + $0x44] sm:$0xf]
        %v618 = vld [vmem:[#allocation9 + $0x48] sm:$0xf]
        %v619 = vld [vmem:[#allocation9 + $0x4c] sm:$0xf]
        %v620 = vld [vmem:[#allocation9 + $0x50] sm:$0xf]
        %v621 = vld [vmem:[#allocation9 + $0x54] sm:$0xf]
        %v622 = vld [vmem:[#allocation9 + $0x58] sm:$0xf]
        %v623 = vld [vmem:[#allocation9 + $0x5c] sm:$0xf]
        %v624 = vld [vmem:[#allocation9 + $0x60] sm:$0xf]
        %v625 = vld [vmem:[#allocation9 + $0x64] sm:$0xf]
        %v626 = vld [vmem:[#allocation9 + $0x68] sm:$0xf]
        %v627 = vld [vmem:[#allocation9 + $0x6c] sm:$0xf]
        %v628 = vld [vmem:[#allocation9 + $0x70] sm:$0xf]
        %v629 = vld [vmem:[#allocation9 + $0x74] sm:$0xf]
        %v630 = vld [vmem:[#allocation9 + $0x78] sm:$0xf]
        %v631 = vld [vmem:[#allocation9 + $0x7c] sm:$0xf]
        %v632 = vld [vmem:[%s7] sm:$0x1]
        %v634 = vlaneseq
        %v635 = vshrl.u32 %v634, 7
        %v636 = vsub.s32 0, %v635
        %v637 = vrot.slane %v632, %v636
        %v671 = vunpack.c.l.b16 %v600
        %v672 = vunpack.c.l.b16 %v601
        %v673 = vunpack.c.l.b16 %v602
        %v674 = vunpack.c.l.b16 %v603
        %v675 = vunpack.c.l.b16 %v604
        %v676 = vunpack.c.l.b16 %v605
        %v677 = vunpack.c.l.b16 %v606
        %v678 = vunpack.c.l.b16 %v607
        %v679 = vunpack.c.l.b16 %v608
        %v680 = vunpack.c.l.b16 %v609
        %v681 = vunpack.c.l.b16 %v610
        %v682 = vunpack.c.l.b16 %v611
        %v683 = vunpack.c.l.b16 %v612
        %v684 = vunpack.c.l.b16 %v613
        %v685 = vunpack.c.l.b16 %v614
        %v686 = vunpack.c.l.b16 %v615
        %v687 = vunpack.c.l.b16 %v616
        %v688 = vunpack.c.l.b16 %v617
        %v689 = vunpack.c.l.b16 %v618
        %v690 = vunpack.c.l.b16 %v619
        %v691 = vunpack.c.l.b16 %v620
        %v692 = vunpack.c.l.b16 %v621
        %v693 = vunpack.c.l.b16 %v622
        %v694 = vunpack.c.l.b16 %v623
        %v695 = vunpack.c.l.b16 %v624
        %v696 = vunpack.c.l.b16 %v625
        %v697 = vunpack.c.l.b16 %v626
        %v698 = vunpack.c.l.b16 %v627
        %v699 = vunpack.c.l.b16 %v628
        %v700 = vunpack.c.l.b16 %v629
        %v701 = vunpack.c.l.b16 %v630
        %v702 = vunpack.c.l.b16 %v631
        %v703 = vpack.c.b16 %v672, %v671
        %v704 = vpack.c.b16 %v674, %v673
        %v705 = vpack.c.b16 %v676, %v675
        %v706 = vpack.c.b16 %v678, %v677
        %v707 = vpack.c.b16 %v680, %v679
        %v708 = vpack.c.b16 %v682, %v681
        %v709 = vpack.c.b16 %v684, %v683
        %v710 = vpack.c.b16 %v686, %v685
        %v711 = vpack.c.b16 %v688, %v687
        %v712 = vpack.c.b16 %v690, %v689
        %v713 = vpack.c.b16 %v692, %v691
        %v714 = vpack.c.b16 %v694, %v693
        %v715 = vpack.c.b16 %v696, %v695
        %v716 = vpack.c.b16 %v698, %v697
        %v717 = vpack.c.b16 %v700, %v699
        %v718 = vpack.c.b16 %v702, %v701
        %735 = vmatprep.subr.bf16.mxu0 0
        %736 = vmatpush1.bf16.msra.mxu0 %v703
        %737 = vmatprep.subr.bf16.mxu0 0
        %738 = vmatpush1.bf16.msra.mxu0 %v704
        %739 = vmatprep.subr.bf16.mxu0 0
        %740 = vmatpush1.bf16.msra.mxu0 %v705
        %741 = vmatprep.subr.bf16.mxu0 0
        %742 = vmatpush1.bf16.msra.mxu0 %v706
        %743 = vmatprep.subr.bf16.mxu0 0
        %744 = vmatpush1.bf16.msra.mxu0 %v707
        %745 = vmatprep.subr.bf16.mxu0 0
        %746 = vmatpush1.bf16.msra.mxu0 %v708
        %747 = vmatprep.subr.bf16.mxu0 0
        %748 = vmatpush1.bf16.msra.mxu0 %v709
        %749 = vmatprep.subr.bf16.mxu0 0
        %750 = vmatpush1.bf16.msra.mxu0 %v710
        %751 = vmatprep.subr.bf16.mxu0 0
        %752 = vmatpush1.bf16.msra.mxu0 %v711
        %753 = vmatprep.subr.bf16.mxu0 0
        %754 = vmatpush1.bf16.msra.mxu0 %v712
        %755 = vmatprep.subr.bf16.mxu0 0
        %756 = vmatpush1.bf16.msra.mxu0 %v713
        %757 = vmatprep.subr.bf16.mxu0 0
        %758 = vmatpush1.bf16.msra.mxu0 %v714
        %759 = vmatprep.subr.bf16.mxu0 0
        %760 = vmatpush1.bf16.msra.mxu0 %v715
        %761 = vmatprep.subr.bf16.mxu0 0
        %762 = vmatpush1.bf16.msra.mxu0 %v716
        %763 = vmatprep.subr.bf16.mxu0 0
        %764 = vmatpush1.bf16.msra.mxu0 %v717
        %765 = vmatprep.subr.bf16.mxu0 0
        %766 = vmatpush1.bf16.msra.mxu0 %v718
        %767 = vmatprep.mubr.bf16.mxu0 %v599
        %768 = vmatmul.mubr.bf16.gmra.mrb[0].mxu0 %v598
        %v769 = vpop.f32.mrb[0].mxu0
        %v770 = vadd.f32 %v637, %v769
        %v771 = vpop.f32.mrb[0].mxu0
        %v772 = vpop.f32.mrb[0].mxu0
        %v773 = vadd.f32 %v637, %v772
        %v774 = vpop.f32.mrb[0].mxu0
        %775 = vdwg.mxu0
        %v776 = vld [vmem:[%s348] sm:$0xf]
        %v777 = vld [vmem:[%s348 + $0x4] sm:$0xf]
        %v778 = vunpack.c.l.bf16 %v776
        %v779 = vunpack.c.l.bf16 %v777
        %v780 = vmul.f32 %v770, %v778
        %v781 = vmul.f32 %v773, %v779
        %782 = vst [vmem:[%s393] sm:$0xff] %v780
        %783 = vst [vmem:[%s393 + $0x8] sm:$0xff] %v781
        %s784 = sand.u32 %s216, 1
        %s785 = scalar_lea.sflag [#allocation5], %s784
        %s786 = sand.u32 %s216, 1
        %s787 = smul.addr %s786, 16
        %s788 = scalar_lea.vmem [#allocation11], %s787
        // Predicated region
        $region69: #{tpu_custom_call.1} parent=51 // pred_check
          %p789 = pneg %p226
        $region70: #{tpu_custom_call.1} parent=51 // pred_check_branch
          %791 = sbr.rel (%p789) target = $region72
        $region71: #{tpu_custom_call.1} parent=51 // pred_region
          %s792 = smul.u32 2, %s30
          %s794 = ssub.s32 256, 256
          %795 = vsyncadd %s785, %s794
          %s796 = smul.addr %s792, 128
          %s797 = scalar_lea.hbm %s8, %s796
          %s798 = sshll.u32 %s788, 4
          %s799 = int_to_ptr.vmem [resolvable:$true] %s798
          %804 = dma.vmem_to_hbm [thread:$0]  %s799, 256, %s797, %s785, 128, 128, 8
        $region72: #{tpu_custom_call.1} parent=51 // pred_fallthru
          _
      $region52: #{tpu_custom_call.1} parent=5 // pred_fallthru
        _
      %p805 = scmp.le.s32.totalorder 2, %s25
      // Predicated region
      $region73: #{tpu_custom_call.1} parent=5 // pred_check
        %p806 = pneg %p805
      $region74: #{tpu_custom_call.1} parent=5 // pred_check_branch
        %808 = sbr.rel (%p806) target = $region76
      $region75: #{tpu_custom_call.1} parent=5 // pred_region
        %s809 = ssub.s32 %s25, 2
        // Predicated region
        $region77: #{tpu_custom_call.1} parent=75 // pred_check
          %p810 = pneg %p232
        $region78: #{tpu_custom_call.1} parent=75 // pred_check_branch
          %812 = sbr.rel (%p810) target = $region80
        $region79: #{tpu_custom_call.1} parent=75 // pred_region
          %s813 = sand.u32 %s217, 1
          %s814 = scalar_lea.sflag [#allocation5], %s813
          %s815 = sand.u32 %s217, 1
          %s816 = smul.addr %s815, 16
          %s817 = scalar_lea.vmem [#allocation11], %s816
          %818 = dma.done %s814, 256
        $region80: #{tpu_custom_call.1} parent=75 // pred_fallthru
          _
      $region76: #{tpu_custom_call.1} parent=5 // pred_fallthru
        _
    $region6: #{tpu_custom_call.1} parent=1 // loop_footer
      %s29 = sadd.s32 1, %s25
    $region7: #{tpu_custom_call.1} parent=1 // loop_footer_branch
      %24 = sbr.rel target = $region3
    $region8: #{tpu_custom_call.1} parent=1 // loop_exit
      _
    %819 = vsyncpa [#allocation4], 1
    %s820 = scalar_lea.sflag [#allocation4], 1
    %821 = vsyncpa %s820, 1
    %822 = vsyncpa [#allocation7], 1
    %s823 = scalar_lea.sflag [#allocation7], 1
    %824 = vsyncpa %s823, 1
    %825 = vsyncpa [#allocation10], 1
    %826 = vsyncpa [#allocation5], 1
    %s827 = scalar_lea.sflag [#allocation5], 1
    %828 = vsyncpa %s827, 1

// kernel: tpu_custom_call.1
$region0: #{tpu_custom_call.1}
  #allocation0 [shape = 'u32[]', space=smem, size = 0x4, offset = 0x4, fixed_abs, tag = 'smem constant byte address 0x4 - core index']
  #allocation1 [shape = 'u32[144,128]{1,0:T(1,128)}', space=vmem, size = 0x12000, scoped, tag = 'internal scratch']
  #allocation2 [shape = 'f32[1,1]{1,0:T(1,128)S(6)}', space=smem, size = 0x200, scoped, tag = 'scoped memory for tpu_custom_call.1']
  %s0 = inlined_call_operand.<no memory space> [shape: f32[1,1], index: 0, kind: input, shape index: {}]
  %s1 = inlined_call_operand.hbm [shape: bf16[32,128], index: 1, kind: input, shape index: {}]
  %s2 = inlined_call_operand.hbm [shape: bf16[32,128], index: 2, kind: input, shape index: {}]
  %s3 = inlined_call_operand.hbm [shape: bf16[128,256], index: 3, kind: input, shape index: {}]
  %s4 = inlined_call_operand.vmem [shape: f32[1,256], index: 4, kind: input, shape index: {}]
  %s5 = inlined_call_operand.vmem [shape: f32[1,256], index: 5, kind: input, shape index: {}]
  %s6 = inlined_call_operand.hbm [shape: bf16[256,128], index: 6, kind: input, shape index: {}]
  %s7 = inlined_call_operand.vmem [shape: f32[1,128], index: 7, kind: input, shape index: {}]
  %s8 = inlined_call_operand.hbm [shape: f32[32,128], index: 8, kind: output, shape index: {}]
  %s9 = sld [smem:[#allocation0]]
  $region81: #{tpu_custom_call.1} parent=0
    _
  %s11 = ssub.s32 1, %s9
  %s12 = scalar_select 0, %s11, %s9
  %13 = sst [smem:[#allocation2]] %s0
  $region1: #{tpu_custom_call.1} parent=0
    #allocation3 [shape = 'u8[8192]{0}', space=vmem, size = 0x2000, scoped, tag = 'input window, operand 1']
    #allocation4 [shape = 's32[2]{0}', space=sflag, size = 0x8, scoped, tag = 'scoped memory for tpu_custom_call.1']
    #allocation5 [shape = 's32[2]{0}', space=sflag, size = 0x8, scoped, tag = 'scoped memory for tpu_custom_call.1']
    #allocation6 [shape = 'u8[8192]{0}', space=vmem, size = 0x2000, scoped, tag = 'input window, operand 2']
    #allocation7 [shape = 's32[2]{0}', space=sflag, size = 0x8, scoped, tag = 'scoped memory for tpu_custom_call.1']
    #allocation8 [shape = 'u8[65536]{0}', space=vmem, size = 0x10000, scoped, tag = 'input window, operand 3, single buffered']
    #allocation9 [shape = 'u8[65536]{0}', space=vmem, size = 0x10000, scoped, tag = 'input window, operand 6, single buffered']
    #allocation10 [shape = 's32[1]{0}', space=sflag, size = 0x4, scoped, tag = 'scoped memory for tpu_custom_call.1']
    #allocation11 [shape = 'u8[16384]{0}', space=vmem, size = 0x4000, scoped, tag = 'output window, operand 0']
    %14 = vsyncpa [#allocation4], 0
    %s15 = scalar_lea.sflag [#allocation4], 1
    %16 = vsyncpa %s15, 0
    %17 = vsyncpa [#allocation7], 0
    %s18 = scalar_lea.sflag [#allocation7], 1
    %19 = vsyncpa %s18, 0
    %20 = vsyncpa [#allocation10], 0
    %21 = vsyncpa [#allocation5], 0
    %s22 = scalar_lea.sflag [#allocation5], 1
    %23 = vsyncpa %s22, 0
    loop: start=0, step=1, limit=4
    $region2: #{tpu_custom_call.1} parent=1 // loop_pre_header
      _
    $region3: #{tpu_custom_call.1} parent=1 // loop_header
      %s25 = sphi 0, %s29
      %p26 = scmp.ge.s32.totalorder %s25, 4
      %s33 = sphi 0, %s33
      %s35 = sphi 0, %s33
      %s36 = sphi 0, %s35
      %s50 = sphi 0, %s36
      %s56 = sphi 0, %s58
      %s59 = sphi 0, %s56
      %s60 = sphi 0, %s59
      %s76 = sphi 0, %s60
      %s82 = sphi 0, %s84
      %s85 = sphi 0, %s82
      %s86 = sphi 0, %s85
      %s102 = sphi 0, %s86
      %s106 = sphi 0, %s106
      %s108 = sphi 0, %s106
      %s109 = sphi 0, %s108
      %s123 = sphi 0, %s109
      %s127 = sphi 0, %s127
      %s129 = sphi 0, %s127
      %s130 = sphi 0, %s129
      %s144 = sphi 0, %s130
      %s148 = sphi 0, %s148
      %s150 = sphi 0, %s148
      %s151 = sphi 0, %s150
      %s165 = sphi 0, %s151
      %s169 = sphi 0, %s169
      %s171 = sphi 0, %s169
      %s172 = sphi 0, %s171
      %s186 = sphi 0, %s172
      %s190 = sphi 0, %s190
      %s192 = sphi 0, %s190
      %s193 = sphi 0, %s192
      %s207 = sphi 0, %s193
      %s213 = sphi 0, %s215
      %s216 = sphi 0, %s213
      %s217 = sphi 0, %s216
      %s233 = sphi 0, %s217
    $region4: #{tpu_custom_call.1} parent=1 // loop_header_branch
      %28 = sbr.rel (%p26) target = $region8
    $region5: #{tpu_custom_call.1} parent=1 // loop_body
      %s30 = ssub.s32 %s25, 1
      %s31 = ssub.s32 %s25, 2
      %s32 = sadd.s32 %s25, 1
      %s34 = sadd.s32 %s33, 1
      %p37 = scmp.eq.s32.totalorder %s25, 1
      %p38 = scmp.ne.s32.totalorder %s33, %s35
      %p39 = scmp.eq.s32.totalorder %s25, 0
      %p40 = por %p38, %p39
      %p41 = scmp.ne.s32.totalorder %s33, %s35
      %p42 = scmp.eq.s32.totalorder %s30, 1
      %p43 = por %p41, %p42
      %p44 = scmp.ne.s32.totalorder %s35, %s36
      %p45 = scmp.eq.s32.totalorder %s30, 0
      %p46 = por %p44, %p45
      %p47 = scmp.ne.s32.totalorder %s35, %s36
      %p48 = scmp.eq.s32.totalorder %s31, 1
      %p49 = por %p47, %p48
      %p51 = scmp.ne.s32.totalorder %s36, %s50
      %p52 = scmp.eq.s32.totalorder %s31, 0
      %p53 = por %p51, %p52
      %s54 = ssub.s32 %s25, %s32
      %p55 = scmp.eq.s32.totalorder %s54, 0
      %s57 = sadd.s32 %s56, 1
      %s58 = scalar_select %p55, %s56, %s57
      %p61 = pneg %p55
      %p62 = scmp.eq.s32.totalorder %s25, 1
      %p63 = por %p61, %p62
      %p64 = scmp.ne.s32.totalorder %s56, %s59
      %p65 = scmp.eq.s32.totalorder %s25, 0
      %p66 = por %p64, %p65
      %p67 = scmp.ne.s32.totalorder %s56, %s59
      %p68 = scmp.eq.s32.totalorder %s30, 1
      %p69 = por %p67, %p68
      %p70 = scmp.ne.s32.totalorder %s59, %s60
      %p71 = scmp.eq.s32.totalorder %s30, 0
      %p72 = por %p70, %p71
      %p73 = scmp.ne.s32.totalorder %s59, %s60
      %p74 = scmp.eq.s32.totalorder %s31, 1
      %p75 = por %p73, %p74
      %p77 = scmp.ne.s32.totalorder %s60, %s76
      %p78 = scmp.eq.s32.totalorder %s31, 0
      %p79 = por %p77, %p78
      %s80 = ssub.s32 %s25, %s32
      %p81 = scmp.eq.s32.totalorder %s80, 0
      %s83 = sadd.s32 %s82, 1
      %s84 = scalar_select %p81, %s82, %s83
      %p87 = pneg %p81
      %p88 = scmp.eq.s32.totalorder %s25, 1
      %p89 = por %p87, %p88
      %p90 = scmp.ne.s32.totalorder %s82, %s85
      %p91 = scmp.eq.s32.totalorder %s25, 0
      %p92 = por %p90, %p91
      %p93 = scmp.ne.s32.totalorder %s82, %s85
      %p94 = scmp.eq.s32.totalorder %s30, 1
      %p95 = por %p93, %p94
      %p96 = scmp.ne.s32.totalorder %s85, %s86
      %p97 = scmp.eq.s32.totalorder %s30, 0
      %p98 = por %p96, %p97
      %p99 = scmp.ne.s32.totalorder %s85, %s86
      %p100 = scmp.eq.s32.totalorder %s31, 1
      %p101 = por %p99, %p100
      %p103 = scmp.ne.s32.totalorder %s86, %s102
      %p104 = scmp.eq.s32.totalorder %s31, 0
      %p105 = por %p103, %p104
      %s107 = sadd.s32 %s106, 1
      %p110 = scmp.eq.s32.totalorder %s25, 1
      %p111 = scmp.ne.s32.totalorder %s106, %s108
      %p112 = scmp.eq.s32.totalorder %s25, 0
      %p113 = por %p111, %p112
      %p114 = scmp.ne.s32.totalorder %s106, %s108
      %p115 = scmp.eq.s32.totalorder %s30, 1
      %p116 = por %p114, %p115
      %p117 = scmp.ne.s32.totalorder %s108, %s109
      %p118 = scmp.eq.s32.totalorder %s30, 0
      %p119 = por %p117, %p118
      %p120 = scmp.ne.s32.totalorder %s108, %s109
      %p121 = scmp.eq.s32.totalorder %s31, 1
      %p122 = por %p120, %p121
      %p124 = scmp.ne.s32.totalorder %s109, %s123
      %p125 = scmp.eq.s32.totalorder %s31, 0
      %p126 = por %p124, %p125
      %s128 = sadd.s32 %s127, 1
      %p131 = scmp.eq.s32.totalorder %s25, 1
      %p132 = scmp.ne.s32.totalorder %s127, %s129
      %p133 = scmp.eq.s32.totalorder %s25, 0
      %p134 = por %p132, %p133
      %p135 = scmp.ne.s32.totalorder %s127, %s129
      %p136 = scmp.eq.s32.totalorder %s30, 1
      %p137 = por %p135, %p136
      %p138 = scmp.ne.s32.totalorder %s129, %s130
      %p139 = scmp.eq.s32.totalorder %s30, 0
      %p140 = por %p138, %p139
      %p141 = scmp.ne.s32.totalorder %s129, %s130
      %p142 = scmp.eq.s32.totalorder %s31, 1
      %p143 = por %p141, %p142
      %p145 = scmp.ne.s32.totalorder %s130, %s144
      %p146 = scmp.eq.s32.totalorder %s31, 0
      %p147 = por %p145, %p146
      %s149 = sadd.s32 %s148, 1
      %p152 = scmp.eq.s32.totalorder %s25, 1
      %p153 = scmp.ne.s32.totalorder %s148, %s150
      %p154 = scmp.eq.s32.totalorder %s25, 0
      %p155 = por %p153, %p154
      %p156 = scmp.ne.s32.totalorder %s148, %s150
      %p157 = scmp.eq.s32.totalorder %s30, 1
      %p158 = por %p156, %p157
      %p159 = scmp.ne.s32.totalorder %s150, %s151
      %p160 = scmp.eq.s32.totalorder %s30, 0
      %p161 = por %p159, %p160
      %p162 = scmp.ne.s32.totalorder %s150, %s151
      %p163 = scmp.eq.s32.totalorder %s31, 1
      %p164 = por %p162, %p163
      %p166 = scmp.ne.s32.totalorder %s151, %s165
      %p167 = scmp.eq.s32.totalorder %s31, 0
      %p168 = por %p166, %p167
      %s170 = sadd.s32 %s169, 1
      %p173 = scmp.eq.s32.totalorder %s25, 1
      %p174 = scmp.ne.s32.totalorder %s169, %s171
      %p175 = scmp.eq.s32.totalorder %s25, 0
      %p176 = por %p174, %p175
      %p177 = scmp.ne.s32.totalorder %s169, %s171
      %p178 = scmp.eq.s32.totalorder %s30, 1
      %p179 = por %p177, %p178
      %p180 = scmp.ne.s32.totalorder %s171, %s172
      %p181 = scmp.eq.s32.totalorder %s30, 0
      %p182 = por %p180, %p181
      %p183 = scmp.ne.s32.totalorder %s171, %s172
      %p184 = scmp.eq.s32.totalorder %s31, 1
      %p185 = por %p183, %p184
      %p187 = scmp.ne.s32.totalorder %s172, %s186
      %p188 = scmp.eq.s32.totalorder %s31, 0
      %p189 = por %p187, %p188
      %s191 = sadd.s32 %s190, 1
      %p194 = scmp.eq.s32.totalorder %s25, 1
      %p195 = scmp.ne.s32.totalorder %s190, %s192
      %p196 = scmp.eq.s32.totalorder %s25, 0
      %p197 = por %p195, %p196
      %p198 = scmp.ne.s32.totalorder %s190, %s192
      %p199 = scmp.eq.s32.totalorder %s30, 1
      %p200 = por %p198, %p199
      %p201 = scmp.ne.s32.totalorder %s192, %s193
      %p202 = scmp.eq.s32.totalorder %s30, 0
      %p203 = por %p201, %p202
      %p204 = scmp.ne.s32.totalorder %s192, %s193
      %p205 = scmp.eq.s32.totalorder %s31, 1
      %p206 = por %p204, %p205
      %p208 = scmp.ne.s32.totalorder %s193, %s207
      %p209 = scmp.eq.s32.totalorder %s31, 0
      %p210 = por %p208, %p209
      %s211 = ssub.s32 %s25, %s32
      %p212 = scmp.eq.s32.totalorder %s211, 0
      %s214 = sadd.s32 %s213, 1
      %s215 = scalar_select %p212, %s213, %s214
      %p218 = pneg %p212
      %p219 = scmp.eq.s32.totalorder %s25, 1
      %p220 = por %p218, %p219
      %p221 = scmp.ne.s32.totalorder %s213, %s216
      %p222 = scmp.eq.s32.totalorder %s25, 0
      %p223 = por %p221, %p222
      %p224 = scmp.ne.s32.totalorder %s213, %s216
      %p225 = scmp.eq.s32.totalorder %s30, 1
      %p226 = por %p224, %p225
      %p227 = scmp.ne.s32.totalorder %s216, %s217
      %p228 = scmp.eq.s32.totalorder %s30, 0
      %p229 = por %p227, %p228
      %p230 = scmp.ne.s32.totalorder %s216, %s217
      %p231 = scmp.eq.s32.totalorder %s31, 1
      %p232 = por %p230, %p231
      %p234 = scmp.ne.s32.totalorder %s217, %s233
      %p235 = scmp.eq.s32.totalorder %s31, 0
      %p236 = por %p234, %p235
      %p237 = scmp.le.s32.totalorder 1, %s25
      %p238 = scmp.lt.s32.totalorder %s25, 3
      %p239 = pnand %p237, %p238
      %p240 = pneg %p239
      // Predicated region
      $region9: #{tpu_custom_call.1} parent=5 // pred_check
        _
      $region10: #{tpu_custom_call.1} parent=5 // pred_check_branch
        %242 = sbr.rel (%p239) target = $region12
      $region11: #{tpu_custom_call.1} parent=5 // pred_region
        %s243 = ssub.s32 %s25, 1
        // Predicated region
        $region13: #{tpu_custom_call.1} parent=11 // pred_check
          %p244 = pneg %p46
        $region14: #{tpu_custom_call.1} parent=11 // pred_check_branch
          %246 = sbr.rel (%p244) target = $region16
        $region15: #{tpu_custom_call.1} parent=11 // pred_region
          _
        $region16: #{tpu_custom_call.1} parent=11 // pred_fallthru
          _
        // Predicated region
        $region17: #{tpu_custom_call.1} parent=11 // pred_check
          %p247 = pneg %p119
        $region18: #{tpu_custom_call.1} parent=11 // pred_check_branch
          %249 = sbr.rel (%p247) target = $region20
        $region19: #{tpu_custom_call.1} parent=11 // pred_region
          %s251 = ssub.s32 2048, 2048
          %252 = vsyncadd [#allocation7], %s251
          %s253 = sshll.u32 [#allocation8], 4
          %s254 = int_to_ptr.vmem [resolvable:$true] %s253
          %259 = dma.hbm_to_vmem [thread:$0]  %s3, 2048, %s254, [#allocation7], 128, 128, 8
        $region20: #{tpu_custom_call.1} parent=11 // pred_fallthru
          _
        // Predicated region
        $region21: #{tpu_custom_call.1} parent=11 // pred_check
          %p260 = pneg %p140
        $region22: #{tpu_custom_call.1} parent=11 // pred_check_branch
          %262 = sbr.rel (%p260) target = $region24
        $region23: #{tpu_custom_call.1} parent=11 // pred_region
          _
        $region24: #{tpu_custom_call.1} parent=11 // pred_fallthru
          _
        // Predicated region
        $region25: #{tpu_custom_call.1} parent=11 // pred_check
          %p263 = pneg %p161
        $region26: #{tpu_custom_call.1} parent=11 // pred_check_branch
          %265 = sbr.rel (%p263) target = $region28
        $region27: #{tpu_custom_call.1} parent=11 // pred_region
          _
        $region28: #{tpu_custom_call.1} parent=11 // pred_fallthru
          _
        // Predicated region
        $region29: #{tpu_custom_call.1} parent=11 // pred_check
          %p266 = pneg %p182
        $region30: #{tpu_custom_call.1} parent=11 // pred_check_branch
          %268 = sbr.rel (%p266) target = $region32
        $region31: #{tpu_custom_call.1} parent=11 // pred_region
          %s270 = ssub.s32 2048, 2048
          %271 = vsyncadd [#allocation10], %s270
          %s272 = sshll.u32 [#allocation9], 4
          %s273 = int_to_ptr.vmem [resolvable:$true] %s272
          %278 = dma.hbm_to_vmem [thread:$0]  %s6, 2048, %s273, [#allocation10], 64, 64, 4
        $region32: #{tpu_custom_call.1} parent=11 // pred_fallthru
          _
        // Predicated region
        $region33: #{tpu_custom_call.1} parent=11 // pred_check
          %p279 = pneg %p203
        $region34: #{tpu_custom_call.1} parent=11 // pred_check_branch
          %281 = sbr.rel (%p279) target = $region36
        $region35: #{tpu_custom_call.1} parent=11 // pred_region
          _
        $region36: #{tpu_custom_call.1} parent=11 // pred_fallthru
          _
      $region12: #{tpu_custom_call.1} parent=5 // pred_fallthru
        _
      %p282 = scmp.lt.s32.totalorder %s25, 2
      // Predicated region
      $region37: #{tpu_custom_call.1} parent=5 // pred_check
        %p283 = pneg %p282
      $region38: #{tpu_custom_call.1} parent=5 // pred_check_branch
        %285 = sbr.rel (%p283) target = $region40
      $region39: #{tpu_custom_call.1} parent=5 // pred_region
        // Predicated region
        $region41: #{tpu_custom_call.1} parent=39 // pred_check
          %p286 = pneg %p66
        $region42: #{tpu_custom_call.1} parent=39 // pred_check_branch
          %288 = sbr.rel (%p286) target = $region44
        $region43: #{tpu_custom_call.1} parent=39 // pred_region
          %s289 = sand.u32 %s56, 1
          %s290 = scalar_lea.sflag [#allocation4], %s289
          %s291 = sand.u32 %s56, 1
          %s292 = smul.addr %s291, 8
          %s293 = scalar_lea.vmem [#allocation3], %s292
          %s294 = smul.u32 2, %s25
          %s296 = ssub.s32 128, 128
          %297 = vsyncadd %s290, %s296
          %s298 = smul.addr %s294, 64
          %s299 = scalar_lea.hbm %s1, %s298
          %s300 = sshll.u32 %s293, 4
          %s301 = int_to_ptr.vmem [resolvable:$true] %s300
          %306 = dma.hbm_to_vmem [thread:$0]  %s299, 128, %s301, %s290, 64, 64, 4
        $region44: #{tpu_custom_call.1} parent=39 // pred_fallthru
          _
        // Predicated region
        $region45: #{tpu_custom_call.1} parent=39 // pred_check
          %p307 = pneg %p92
        $region46: #{tpu_custom_call.1} parent=39 // pred_check_branch
          %309 = sbr.rel (%p307) target = $region48
        $region47: #{tpu_custom_call.1} parent=39 // pred_region
          %s310 = sand.u32 %s25, 1
          %s311 = scalar_lea.sflag [#allocation7], %s310
          %s312 = sand.u32 %s82, 1
          %s313 = smul.addr %s312, 8
          %s314 = scalar_lea.vmem [#allocation6], %s313
          %s315 = smul.u32 2, %s25
          %s317 = ssub.s32 128, 128
          %318 = vsyncadd %s311, %s317
          %s319 = smul.addr %s315, 64
          %s320 = scalar_lea.hbm %s2, %s319
          %s321 = sshll.u32 %s314, 4
          %s322 = int_to_ptr.vmem [resolvable:$true] %s321
          %327 = dma.hbm_to_vmem [thread:$0]  %s320, 128, %s322, %s311, 64, 64, 4
        $region48: #{tpu_custom_call.1} parent=39 // pred_fallthru
          _
      $region40: #{tpu_custom_call.1} parent=5 // pred_fallthru
        _
      %p328 = scmp.le.s32.totalorder 1, %s25
      %p329 = scmp.lt.s32.totalorder %s25, 3
      %p330 = pnand %p328, %p329
      %p331 = pneg %p330
      // Predicated region
      $region49: #{tpu_custom_call.1} parent=5 // pred_check
        _
      $region50: #{tpu_custom_call.1} parent=5 // pred_check_branch
        %333 = sbr.rel (%p330) target = $region52
      $region51: #{tpu_custom_call.1} parent=5 // pred_region
        %s334 = ssub.s32 %s25, 1
        %s335 = sand.u32 %s59, 1
        %s336 = scalar_lea.sflag [#allocation4], %s335
        %s337 = sand.u32 %s59, 1
        %s338 = smul.addr %s337, 8
        %s339 = scalar_lea.vmem [#allocation3], %s338
        // Predicated region
        $region53: #{tpu_custom_call.1} parent=51 // pred_check
          %p340 = pneg %p72
        $region54: #{tpu_custom_call.1} parent=51 // pred_check_branch
          %342 = sbr.rel (%p340) target = $region56
        $region55: #{tpu_custom_call.1} parent=51 // pred_region
          %343 = dma.done %s336, 128
        $region56: #{tpu_custom_call.1} parent=51 // pred_fallthru
          _
        %s344 = sand.u32 %s30, 1
        %s345 = scalar_lea.sflag [#allocation7], %s344
        %s346 = sand.u32 %s85, 1
        %s347 = smul.addr %s346, 8
        %s348 = scalar_lea.vmem [#allocation6], %s347
        // Predicated region
        $region57: #{tpu_custom_call.1} parent=51 // pred_check
          %p349 = pneg %p98
        $region58: #{tpu_custom_call.1} parent=51 // pred_check_branch
          %351 = sbr.rel (%p349) target = $region60
        $region59: #{tpu_custom_call.1} parent=51 // pred_region
          %352 = dma.done %s345, 128
        $region60: #{tpu_custom_call.1} parent=51 // pred_fallthru
          _
        // Predicated region
        $region61: #{tpu_custom_call.1} parent=51 // pred_check
          %p353 = pneg %p119
        $region62: #{tpu_custom_call.1} parent=51 // pred_check_branch
          %355 = sbr.rel (%p353) target = $region64
        $region63: #{tpu_custom_call.1} parent=51 // pred_region
          %356 = dma.done [#allocation7], 2048
        $region64: #{tpu_custom_call.1} parent=51 // pred_fallthru
          _
        // Predicated region
        $region65: #{tpu_custom_call.1} parent=51 // pred_check
          %p357 = pneg %p182
        $region66: #{tpu_custom_call.1} parent=51 // pred_check_branch
          %359 = sbr.rel (%p357) target = $region68
        $region67: #{tpu_custom_call.1} parent=51 // pred_region
          %360 = dma.done [#allocation10], 2048
        $region68: #{tpu_custom_call.1} parent=51 // pred_fallthru
          _
        %p361 = pneg %p46
        %p362 = pneg %p43
        %s363 = sand.u32 %s59, 1
        %s364 = scalar_lea.sflag [#allocation4], %s363
        %s365 = sand.u32 %s59, 1
        %s366 = smul.addr %s365, 8
        %s367 = scalar_lea.vmem [#allocation3], %s366
        %p368 = pneg %p72
        %p369 = pneg %p69
        %s370 = sand.u32 %s30, 1
        %s371 = scalar_lea.sflag [#allocation7], %s370
        %s372 = sand.u32 %s85, 1
        %s373 = smul.addr %s372, 8
        %s374 = scalar_lea.vmem [#allocation6], %s373
        %p375 = pneg %p98
        %p376 = pneg %p95
        %p377 = pneg %p119
        %p378 = pneg %p116
        %p379 = pneg %p140
        %p380 = pneg %p137
        %p381 = pneg %p161
        %p382 = pneg %p158
        %p383 = pneg %p182
        %p384 = pneg %p179
        %p385 = pneg %p203
        %p386 = pneg %p200
        %p387 = pneg %p229
        %p388 = pneg %p226
        %s389 = sand.u32 %s216, 1
        %s390 = scalar_lea.sflag [#allocation5], %s389
        %s391 = sand.u32 %s216, 1
        %s392 = smul.addr %s391, 16
        %s393 = scalar_lea.vmem [#allocation11], %s392
        %s394 = smul.u32 2, %s30
        %s395 = smul.u32 2, %s30
        %s396 = smul.u32 2, %s30
        %s398 = sld [smem:[#allocation2]]
        %v399 = vld [vmem:[%s4] sm:$0x3]
        %v400 = vld [vmem:[%s5] sm:$0x3]
        %v401 = vstv %s398
        %v402 = vmul.f32 %v401, %v400
        %v403 = vadd.f32 %v399, %v402
        %v404 = vld [vmem:[%s339] sm:$0xf]
        %v405 = vld [vmem:[%s339 + $0x4] sm:$0xf]
        %v406 = vld [vmem:[#allocation8] sm:$0xff]
        %v407 = vld [vmem:[#allocation8 + $0x8] sm:$0xff]
        %v408 = vld [vmem:[#allocation8 + $0x10] sm:$0xff]
        %v409 = vld [vmem:[#allocation8 + $0x18] sm:$0xff]
        %v410 = vld [vmem:[#allocation8 + $0x20] sm:$0xff]
        %v411 = vld [vmem:[#allocation8 + $0x28] sm:$0xff]
        %v412 = vld [vmem:[#allocation8 + $0x30] sm:$0xff]
        %v413 = vld [vmem:[#allocation8 + $0x38] sm:$0xff]
        %v414 = vld [vmem:[#allocation8 + $0x40] sm:$0xff]
        %v415 = vld [vmem:[#allocation8 + $0x48] sm:$0xff]
        %v416 = vld [vmem:[#allocation8 + $0x50] sm:$0xff]
        %v417 = vld [vmem:[#allocation8 + $0x58] sm:$0xff]
        %v418 = vld [vmem:[#allocation8 + $0x60] sm:$0xff]
        %v419 = vld [vmem:[#allocation8 + $0x68] sm:$0xff]
        %v420 = vld [vmem:[#allocation8 + $0x70] sm:$0xff]
        %v421 = vld [vmem:[#allocation8 + $0x78] sm:$0xff]
        %v423 = vlaneseq
        %v424 = vshrl.u32 %v423, 7
        %v425 = vsub.s32 0, %v424
        %v426 = vrot.slane %v403, %v425
        %v427 = vlaneseq
        %v428 = vshrl.u32 %v427, 7
        %v429 = vsub.s32 1, %v428
        %v430 = vrot.slane %v403, %v429
        %v435 = vunpack.c.l.b16 %v404
        %v436 = vunpack.c.l.b16 %v405
        %v437 = vpack.c.b16 %v436, %v435
        %v455 = vunpack.c.l.b16 %v406
        %v456 = vunpack.c.h.b16 %v406
        %v457 = vunpack.c.l.b16 %v407
        %v458 = vunpack.c.h.b16 %v407
        %v459 = vunpack.c.l.b16 %v408
        %v460 = vunpack.c.h.b16 %v408
        %v461 = vunpack.c.l.b16 %v409
        %v462 = vunpack.c.h.b16 %v409
        %v463 = vunpack.c.l.b16 %v410
        %v464 = vunpack.c.h.b16 %v410
        %v465 = vunpack.c.l.b16 %v411
        %v466 = vunpack.c.h.b16 %v411
        %v467 = vunpack.c.l.b16 %v412
        %v468 = vunpack.c.h.b16 %v412
        %v469 = vunpack.c.l.b16 %v413
        %v470 = vunpack.c.h.b16 %v413
        %v471 = vunpack.c.l.b16 %v414
        %v472 = vunpack.c.h.b16 %v414
        %v473 = vunpack.c.l.b16 %v415
        %v474 = vunpack.c.h.b16 %v415
        %v475 = vunpack.c.l.b16 %v416
        %v476 = vunpack.c.h.b16 %v416
        %v477 = vunpack.c.l.b16 %v417
        %v478 = vunpack.c.h.b16 %v417
        %v479 = vunpack.c.l.b16 %v418
        %v480 = vunpack.c.h.b16 %v418
        %v481 = vunpack.c.l.b16 %v419
        %v482 = vunpack.c.h.b16 %v419
        %v483 = vunpack.c.l.b16 %v420
        %v484 = vunpack.c.h.b16 %v420
        %v485 = vunpack.c.l.b16 %v421
        %v486 = vunpack.c.h.b16 %v421
        %v487 = vpack.c.b16 %v457, %v455
        %v488 = vpack.c.b16 %v458, %v456
        %v489 = vpack.c.b16 %v461, %v459
        %v490 = vpack.c.b16 %v462, %v460
        %v491 = vpack.c.b16 %v465, %v463
        %v492 = vpack.c.b16 %v466, %v464
        %v493 = vpack.c.b16 %v469, %v467
        %v494 = vpack.c.b16 %v470, %v468
        %v495 = vpack.c.b16 %v473, %v471
        %v496 = vpack.c.b16 %v474, %v472
        %v497 = vpack.c.b16 %v477, %v475
        %v498 = vpack.c.b16 %v478, %v476
        %v499 = vpack.c.b16 %v481, %v479
        %v500 = vpack.c.b16 %v482, %v480
        %v501 = vpack.c.b16 %v485, %v483
        %v502 = vpack.c.b16 %v486, %v484
        %519 = vmatprep.subr.bf16.mxu0 %v488
        %520 = vmatpush1.bf16.msra.mxu0 %v487
        %521 = vmatprep.subr.bf16.mxu0 %v490
        %522 = vmatpush1.bf16.msra.mxu0 %v489
        %523 = vmatprep.subr.bf16.mxu0 %v492
        %524 = vmatpush1.bf16.msra.mxu0 %v491
        %525 = vmatprep.subr.bf16.mxu0 %v494
        %526 = vmatpush1.bf16.msra.mxu0 %v493
        %527 = vmatprep.subr.bf16.mxu0 %v496
        %528 = vmatpush1.bf16.msra.mxu0 %v495
        %529 = vmatprep.subr.bf16.mxu0 %v498
        %530 = vmatpush1.bf16.msra.mxu0 %v497
        %531 = vmatprep.subr.bf16.mxu0 %v500
        %532 = vmatpush1.bf16.msra.mxu0 %v499
        %533 = vmatprep.subr.bf16.mxu0 %v502
        %534 = vmatpush1.bf16.msra.mxu0 %v501
        %535 = vmatprep.subr.bf16.mxu0 0
        %536 = vmatpush1.bf16.msra.mxu0 0
        %537 = vmatprep.subr.bf16.mxu0 0
        %538 = vmatpush1.bf16.msra.mxu0 0
        %539 = vmatprep.subr.bf16.mxu0 0
        %540 = vmatpush1.bf16.msra.mxu0 0
        %541 = vmatprep.subr.bf16.mxu0 0
        %542 = vmatpush1.bf16.msra.mxu0 0
        %543 = vmatprep.subr.bf16.mxu0 0
        %544 = vmatpush1.bf16.msra.mxu0 0
        %545 = vmatprep.subr.bf16.mxu0 0
        %546 = vmatpush1.bf16.msra.mxu0 0
        %547 = vmatprep.subr.bf16.mxu0 0
        %548 = vmatpush1.bf16.msra.mxu0 0
        %549 = vmatprep.subr.bf16.mxu0 0
        %550 = vmatpush1.bf16.msra.mxu0 0
        %551 = vmatprep.mubr.bf16.mxu0 0
        %552 = vmatmul.mubr.bf16.gmra.mrb[0].mxu0 %v437
        %v553 = vpop.f32.mrb[0].mxu0
        %v554 = vadd.f32 %v426, %v553
        %v555 = vpop.f32.mrb[0].mxu0
        %v556 = vadd.f32 %v430, %v555
        %v557 = vpop.f32.mrb[0].mxu0
        %v558 = vadd.f32 %v426, %v557
        %v559 = vpop.f32.mrb[0].mxu0
        %v560 = vadd.f32 %v430, %v559
        %561 = vdwg.mxu0
        %v562 = vmul.f32 %v554, %v554
        %v563 = vmul.f32 %v556, %v556
        %v564 = vmul.f32 %v558, %v558
        %v565 = vmul.f32 %v560, %v560
        %v566 = vmul.f32 %v554, %v562
        %v567 = vmul.f32 %v556, %v563
        %v568 = vmul.f32 %v558, %v564
        %v569 = vmul.f32 %v560, %v565
        %v570 = vmul.f32 %v566, 0.044715
        %v571 = vmul.f32 %v567, 0.044715
        %v572 = vmul.f32 %v568, 0.044715
        %v573 = vmul.f32 %v569, 0.044715
        %v574 = vadd.f32 %v554, %v570
        %v575 = vadd.f32 %v556, %v571
        %v576 = vadd.f32 %v558, %v572
        %v577 = vadd.f32 %v560, %v573
        %v578 = vmul.f32 %v574, 0.7978846
        %v579 = vmul.f32 %v575, 0.7978846
        %v580 = vmul.f32 %v576, 0.7978846
        %v581 = vmul.f32 %v577, 0.7978846
        %v582 = vtanh.pop %v578
        %v583 = vtanh.pop %v579
        %v584 = vtanh.pop %v580
        %v585 = vtanh.pop %v581
        %v586 = vadd.f32 %v582, 1.0
        %v587 = vadd.f32 %v583, 1.0
        %v588 = vadd.f32 %v584, 1.0
        %v589 = vadd.f32 %v585, 1.0
        %v590 = vmul.f32 %v586, 0.5
        %v591 = vmul.f32 %v587, 0.5
        %v592 = vmul.f32 %v588, 0.5
        %v593 = vmul.f32 %v589, 0.5
        %v594 = vmul.f32 %v554, %v590
        %v595 = vmul.f32 %v556, %v591
        %v596 = vmul.f32 %v558, %v592
        %v597 = vmul.f32 %v560, %v593
        %v598 = vpack.c.bf16 %v596, %v594
        %v599 = vpack.c.bf16 %v597, %v595
        %v600 = vld [vmem:[#allocation9] sm:$0xf]
        %v601 = vld [vmem:[#allocation9 + $0x4] sm:$0xf]
        %v602 = vld [vmem:[#allocation9 + $0x8] sm:$0xf]
        %v603 = vld [vmem:[#allocation9 + $0xc] sm:$0xf]
        %v604 = vld [vmem:[#allocation9 + $0x10] sm:$0xf]
        %v605 = vld [vmem:[#allocation9 + $0x14] sm:$0xf]
        %v606 = vld [vmem:[#allocation9 + $0x18] sm:$0xf]
        %v607 = vld [vmem:[#allocation9 + $0x1c] sm:$0xf]
        %v608 = vld [vmem:[#allocation9 + $0x20] sm:$0xf]
        %v609 = vld [vmem:[#allocation9 + $0x24] sm:$0xf]
        %v610 = vld [vmem:[#allocation9 + $0x28] sm:$0xf]
        %v611 = vld [vmem:[#allocation9 + $0x2c] sm:$0xf]
        %v612 = vld [vmem:[#allocation9 + $0x30] sm:$0xf]
        %v613 = vld [vmem:[#allocation9 + $0x34] sm:$0xf]
        %v614 = vld [vmem:[#allocation9 + $0x38] sm:$0xf]
        %v615 = vld [vmem:[#allocation9 + $0x3c] sm:$0xf]
        %v616 = vld [vmem:[#allocation9 + $0x40] sm:$0xf]
        %v617 = vld [vmem:[#allocation9 + $0x44] sm:$0xf]
        %v618 = vld [vmem:[#allocation9 + $0x48] sm:$0xf]
        %v619 = vld [vmem:[#allocation9 + $0x4c] sm:$0xf]
        %v620 = vld [vmem:[#allocation9 + $0x50] sm:$0xf]
        %v621 = vld [vmem:[#allocation9 + $0x54] sm:$0xf]
        %v622 = vld [vmem:[#allocation9 + $0x58] sm:$0xf]
        %v623 = vld [vmem:[#allocation9 + $0x5c] sm:$0xf]
        %v624 = vld [vmem:[#allocation9 + $0x60] sm:$0xf]
        %v625 = vld [vmem:[#allocation9 + $0x64] sm:$0xf]
        %v626 = vld [vmem:[#allocation9 + $0x68] sm:$0xf]
        %v627 = vld [vmem:[#allocation9 + $0x6c] sm:$0xf]
        %v628 = vld [vmem:[#allocation9 + $0x70] sm:$0xf]
        %v629 = vld [vmem:[#allocation9 + $0x74] sm:$0xf]
        %v630 = vld [vmem:[#allocation9 + $0x78] sm:$0xf]
        %v631 = vld [vmem:[#allocation9 + $0x7c] sm:$0xf]
        %v632 = vld [vmem:[%s7] sm:$0x1]
        %v634 = vlaneseq
        %v635 = vshrl.u32 %v634, 7
        %v636 = vsub.s32 0, %v635
        %v637 = vrot.slane %v632, %v636
        %v671 = vunpack.c.l.b16 %v600
        %v672 = vunpack.c.l.b16 %v601
        %v673 = vunpack.c.l.b16 %v602
        %v674 = vunpack.c.l.b16 %v603
        %v675 = vunpack.c.l.b16 %v604
        %v676 = vunpack.c.l.b16 %v605
        %v677 = vunpack.c.l.b16 %v606
        %v678 = vunpack.c.l.b16 %v607
        %v679 = vunpack.c.l.b16 %v608
        %v680 = vunpack.c.l.b16 %v609
        %v681 = vunpack.c.l.b16 %v610
        %v682 = vunpack.c.l.b16 %v611
        %v683 = vunpack.c.l.b16 %v612
        %v684 = vunpack.c.l.b16 %v613
        %v685 = vunpack.c.l.b16 %v614
        %v686 = vunpack.c.l.b16 %v615
        %v687 = vunpack.c.l.b16 %v616
        %v688 = vunpack.c.l.b16 %v617
        %v689 = vunpack.c.l.b16 %v618
        %v690 = vunpack.c.l.b16 %v619
        %v691 = vunpack.c.l.b16 %v620
        %v692 = vunpack.c.l.b16 %v621
        %v693 = vunpack.c.l.b16 %v622
        %v694 = vunpack.c.l.b16 %v623
        %v695 = vunpack.c.l.b16 %v624
        %v696 = vunpack.c.l.b16 %v625
        %v697 = vunpack.c.l.b16 %v626
        %v698 = vunpack.c.l.b16 %v627
        %v699 = vunpack.c.l.b16 %v628
        %v700 = vunpack.c.l.b16 %v629
        %v701 = vunpack.c.l.b16 %v630
        %v702 = vunpack.c.l.b16 %v631
        %v703 = vpack.c.b16 %v672, %v671
        %v704 = vpack.c.b16 %v674, %v673
        %v705 = vpack.c.b16 %v676, %v675
        %v706 = vpack.c.b16 %v678, %v677
        %v707 = vpack.c.b16 %v680, %v679
        %v708 = vpack.c.b16 %v682, %v681
        %v709 = vpack.c.b16 %v684, %v683
        %v710 = vpack.c.b16 %v686, %v685
        %v711 = vpack.c.b16 %v688, %v687
        %v712 = vpack.c.b16 %v690, %v689
        %v713 = vpack.c.b16 %v692, %v691
        %v714 = vpack.c.b16 %v694, %v693
        %v715 = vpack.c.b16 %v696, %v695
        %v716 = vpack.c.b16 %v698, %v697
        %v717 = vpack.c.b16 %v700, %v699
        %v718 = vpack.c.b16 %v702, %v701
        %735 = vmatprep.subr.bf16.mxu0 0
        %736 = vmatpush1.bf16.msra.mxu0 %v703
        %737 = vmatprep.subr.bf16.mxu0 0
        %738 = vmatpush1.bf16.msra.mxu0 %v704
        %739 = vmatprep.subr.bf16.mxu0 0
        %740 = vmatpush1.bf16.msra.mxu0 %v705
        %741 = vmatprep.subr.bf16.mxu0 0
        %742 = vmatpush1.bf16.msra.mxu0 %v706
        %743 = vmatprep.subr.bf16.mxu0 0
        %744 = vmatpush1.bf16.msra.mxu0 %v707
        %745 = vmatprep.subr.bf16.mxu0 0
        %746 = vmatpush1.bf16.msra.mxu0 %v708
        %747 = vmatprep.subr.bf16.mxu0 0
        %748 = vmatpush1.bf16.msra.mxu0 %v709
        %749 = vmatprep.subr.bf16.mxu0 0
        %750 = vmatpush1.bf16.msra.mxu0 %v710
        %751 = vmatprep.subr.bf16.mxu0 0
        %752 = vmatpush1.bf16.msra.mxu0 %v711
        %753 = vmatprep.subr.bf16.mxu0 0
        %754 = vmatpush1.bf16.msra.mxu0 %v712
        %755 = vmatprep.subr.bf16.mxu0 0
        %756 = vmatpush1.bf16.msra.mxu0 %v713
        %757 = vmatprep.subr.bf16.mxu0 0
        %758 = vmatpush1.bf16.msra.mxu0 %v714
        %759 = vmatprep.subr.bf16.mxu0 0
        %760 = vmatpush1.bf16.msra.mxu0 %v715
        %761 = vmatprep.subr.bf16.mxu0 0
        %762 = vmatpush1.bf16.msra.mxu0 %v716
        %763 = vmatprep.subr.bf16.mxu0 0
        %764 = vmatpush1.bf16.msra.mxu0 %v717
        %765 = vmatprep.subr.bf16.mxu0 0
        %766 = vmatpush1.bf16.msra.mxu0 %v718
        %767 = vmatprep.mubr.bf16.mxu0 %v599
        %768 = vmatmul.mubr.bf16.gmra.mrb[0].mxu0 %v598
        %v769 = vpop.f32.mrb[0].mxu0
        %v770 = vadd.f32 %v637, %v769
        %v771 = vpop.f32.mrb[0].mxu0
        %v772 = vpop.f32.mrb[0].mxu0
        %v773 = vadd.f32 %v637, %v772
        %v774 = vpop.f32.mrb[0].mxu0
        %775 = vdwg.mxu0
        %v776 = vld [vmem:[%s348] sm:$0xf]
        %v777 = vld [vmem:[%s348 + $0x4] sm:$0xf]
        %v778 = vunpack.c.l.bf16 %v776
        %v779 = vunpack.c.l.bf16 %v777
        %v780 = vmul.f32 %v770, %v778
        %v781 = vmul.f32 %v773, %v779
        %782 = vst [vmem:[%s393] sm:$0xff] %v780
        %783 = vst [vmem:[%s393 + $0x8] sm:$0xff] %v781
        %s784 = sand.u32 %s216, 1
        %s785 = scalar_lea.sflag [#allocation5], %s784
        %s786 = sand.u32 %s216, 1
        %s787 = smul.addr %s786, 16
        %s788 = scalar_lea.vmem [#allocation11], %s787
        // Predicated region
        $region69: #{tpu_custom_call.1} parent=51 // pred_check
          %p789 = pneg %p226
        $region70: #{tpu_custom_call.1} parent=51 // pred_check_branch
          %791 = sbr.rel (%p789) target = $region72
        $region71: #{tpu_custom_call.1} parent=51 // pred_region
          %s792 = smul.u32 2, %s30
          %s794 = ssub.s32 256, 256
          %795 = vsyncadd %s785, %s794
          %s796 = smul.addr %s792, 128
          %s797 = scalar_lea.hbm %s8, %s796
          %s798 = sshll.u32 %s788, 4
          %s799 = int_to_ptr.vmem [resolvable:$true] %s798
          %804 = dma.vmem_to_hbm [thread:$0]  %s799, 256, %s797, %s785, 128, 128, 8
        $region72: #{tpu_custom_call.1} parent=51 // pred_fallthru
          _
      $region52: #{tpu_custom_call.1} parent=5 // pred_fallthru
        _
      %p805 = scmp.le.s32.totalorder 2, %s25
      // Predicated region
      $region73: #{tpu_custom_call.1} parent=5 // pred_check
        %p806 = pneg %p805
      $region74: #{tpu_custom_call.1} parent=5 // pred_check_branch
        %808 = sbr.rel (%p806) target = $region76
      $region75: #{tpu_custom_call.1} parent=5 // pred_region
        %s809 = ssub.s32 %s25, 2
        // Predicated region
        $region77: #{tpu_custom_call.1} parent=75 // pred_check
          %p810 = pneg %p232
        $region78: #{tpu_custom_call.1} parent=75 // pred_check_branch
          %812 = sbr.rel (%p810) target = $region80
        $region79: #{tpu_custom_call.1} parent=75 // pred_region
          %s813 = sand.u32 %s217, 1
          %s814 = scalar_lea.sflag [#allocation5], %s813
          %s815 = sand.u32 %s217, 1
          %s816 = smul.addr %s815, 16
          %s817 = scalar_lea.vmem [#allocation11], %s816
          %818 = dma.done %s814, 256
        $region80: #{tpu_custom_call.1} parent=75 // pred_fallthru
          _
      $region76: #{tpu_custom_call.1} parent=5 // pred_fallthru
        _
    $region6: #{tpu_custom_call.1} parent=1 // loop_footer
      %s29 = sadd.s32 1, %s25
    $region7: #{tpu_custom_call.1} parent=1 // loop_footer_branch
      %24 = sbr.rel target = $region3
    $region8: #{tpu_custom_call.1} parent=1 // loop_exit
      _
    %819 = vsyncpa [#allocation4], 1
    %s820 = scalar_lea.sflag [#allocation4], 1
    %821 = vsyncpa %s820, 1
    %822 = vsyncpa [#allocation7], 1
    %s823 = scalar_lea.sflag [#allocation7], 1
    %824 = vsyncpa %s823, 1
    %825 = vsyncpa [#allocation10], 1
    %826 = vsyncpa [#allocation5], 1
    %s827 = scalar_lea.sflag [#allocation5], 1
    %828 = vsyncpa %s827, 1

</llo_original>
